<compile_context>
chip_gen: v6e
topology: v6e:2x2x1
jax: 0.10.0
libtpu: 0.0.40
codegen_flags: <defaults>
</compile_context>

<pallas_src>
import math
from functools import partial

import jax
import jax.numpy as jnp
from jax.experimental import pallas as pl
from jax.experimental.pallas import tpu as pltpu

LN_EPS = 1e-5                       # torch.nn.LayerNorm default eps
VMEM_LIMIT_BYTES = 48 * 1024 * 1024  # safe on v5e/v6e (128 MiB) and v7x (64 MiB)
_TOKEN_TILES = (512, 256, 128, 64, 32, 16)   # token-row tile candidates
_HIDDEN_TILES = (512, 256, 128)              # MLP hidden-chunk candidates


# ----------------------------- small helpers -------------------------------
def _pick_tile(n, candidates):
    for c in candidates:
        if n % c == 0:
            return c
    return n                        # fall back to the full (untiled) extent


def _cparams(sem):
    return pltpu.CompilerParams(dimension_semantics=sem,
                                vmem_limit_bytes=VMEM_LIMIT_BYTES)


def _layernorm(x, g, b):
    mu = jnp.mean(x, axis=-1, keepdims=True)
    var = jnp.mean(jnp.square(x - mu), axis=-1, keepdims=True)
    return (x - mu) * jax.lax.rsqrt(var + LN_EPS) * g + b


def _gelu_exact(x):
    # nn.GELU default = exact erf-based GELU
    return 0.5 * x * (1.0 + jax.lax.erf(x * (1.0 / math.sqrt(2.0))))


# ------------------------------ Pallas kernels -----------------------------
def _qkv_kernel(x_ref, g_ref, b_ref, wqkv_ref, q_ref, k_ref, v_ref,
                *, scale, compute_dtype):
    """LN1 + fused QKV projection for one token tile. Scale folded into q."""
    x = x_ref[...].astype(jnp.float32)                      # (TN, D)
    D = x.shape[-1]
    h = _layernorm(x, g_ref[...], b_ref[...]).astype(compute_dtype)
    qkv = jnp.dot(h, wqkv_ref[...],
                  preferred_element_type=jnp.float32)       # (TN, 3D) f32 acc
    q_ref[...] = (qkv[:, :D] * scale).astype(q_ref.dtype)
    k_ref[...] = qkv[:, D:2 * D].astype(k_ref.dtype)
    v_ref[...] = qkv[:, 2 * D:].astype(v_ref.dtype)


def _attn_kernel(x_ref, q_ref, k_ref, v_ref, wproj_ref, bproj_ref, o_ref,
                 *, num_heads, compute_dtype):
    """Head-batched attention + output projection + residual for a Q-row tile."""
    x = x_ref[...].astype(jnp.float32)                      # (TN, D) residual
    tn, D = x.shape
    hd = D // num_heads

    # head split/merge layout ops in f32; matmul inputs cast to compute_dtype
    q = q_ref[...].astype(jnp.float32)                      # (TN, D), pre-scaled
    k = k_ref[...].astype(jnp.float32)                      # (Nk, D)
    v = v_ref[...].astype(jnp.float32)
    nk = k.shape[0]
    qh = jnp.transpose(q.reshape(tn, num_heads, hd), (1, 0, 2)).astype(compute_dtype)
    kh = jnp.transpose(k.reshape(nk, num_heads, hd), (1, 0, 2)).astype(compute_dtype)
    vh = jnp.transpose(v.reshape(nk, num_heads, hd), (1, 0, 2)).astype(compute_dtype)

    s = jnp.einsum("hqd,hkd->hqk", qh, kh,
                   preferred_element_type=jnp.float32)      # (H, TN, Nk)
    s = s - jnp.max(s, axis=-1, keepdims=True)
    p = jnp.exp(s)
    p = p * pl.reciprocal(jnp.sum(p, axis=-1, keepdims=True), approx=True)

    oh = jnp.einsum("hqk,hkd->hqd", p.astype(compute_dtype), vh,
                    preferred_element_type=jnp.float32)     # (H, TN, hd)
    attn = jnp.transpose(oh, (1, 0, 2)).reshape(tn, D)      # (TN, D) f32

    proj = jnp.dot(attn.astype(compute_dtype), wproj_ref[...],
                   preferred_element_type=jnp.float32) + bproj_ref[...]
    o_ref[...] = (x + proj).astype(o_ref.dtype)


def _mlp_kernel(x_ref, g2_ref, b2ln_ref, w1_ref, b1_ref, w2_ref, b2_ref,
                flng_ref, flnb_ref, o_ref, hnorm_ref, acc_ref,
                *, apply_final_ln, compute_dtype):
    """LN2 + fc1/GELU/fc2 + residual; hidden dim chunked over grid axis 1."""
    j = pl.program_id(1)

    @pl.when(j == 0)
    def _():
        x = x_ref[...].astype(jnp.float32)                  # (TN, D)
        hnorm_ref[...] = _layernorm(x, g2_ref[...], b2ln_ref[...]).astype(compute_dtype)
        acc_ref[...] = x + b2_ref[...]                      # residual + fc2 bias once

    h = jnp.dot(hnorm_ref[...], w1_ref[...],
                preferred_element_type=jnp.float32) + b1_ref[...]   # (TN, TH)
    h = _gelu_exact(h)
    acc_ref[...] += jnp.dot(h.astype(compute_dtype), w2_ref[...],
                            preferred_element_type=jnp.float32)

    @pl.when(j == pl.num_programs(1) - 1)
    def _():
        out = acc_ref[...]
        if apply_final_ln:                                  # encoder's final norm fused
            out = _layernorm(out, flng_ref[...], flnb_ref[...])
        o_ref[...] = out.astype(o_ref.dtype)


def _ln_only_kernel(x_ref, g_ref, b_ref, o_ref):
    o_ref[...] = _layernorm(x_ref[...].astype(jnp.float32),
                            g_ref[...], b_ref[...]).astype(o_ref.dtype)


# ------------------------------ pallas_call wrappers ------------------------
def _qkv_proj(x, p, num_heads, compute_dtype):
    N, D = x.shape
    tn = _pick_tile(N, _TOKEN_TILES)
    scale = (D // num_heads) ** -0.5
    wqkv = p["wqkv"].astype(compute_dtype)
    kernel = partial(_qkv_kernel, scale=scale, compute_dtype=compute_dtype)
    cost = pl.CostEstimate(flops=6 * N * D * D, transcendentals=0,
                           bytes_accessed=4 * N * D + 6 * D * D + 6 * N * D)
    return pl.pallas_call(
        kernel,
        grid=(N // tn,),
        in_specs=[
            pl.BlockSpec((tn, D), lambda i: (i, 0)),         # x
            pl.BlockSpec((1, D), lambda i: (0, 0)),          # ln1 gamma
            pl.BlockSpec((1, D), lambda i: (0, 0)),          # ln1 beta
            pl.BlockSpec((D, 3 * D), lambda i: (0, 0)),      # fused qkv weight
        ],
        out_specs=(pl.BlockSpec((tn, D), lambda i: (i, 0)),
                   pl.BlockSpec((tn, D), lambda i: (i, 0)),
                   pl.BlockSpec((tn, D), lambda i: (i, 0))),
        out_shape=(jax.ShapeDtypeStruct((N, D), compute_dtype),
                   jax.ShapeDtypeStruct((N, D), compute_dtype),
                   jax.ShapeDtypeStruct((N, D), compute_dtype)),
        compiler_params=_cparams(("parallel",)),
        cost_estimate=cost,
    )(x, p["ln1_g"], p["ln1_b"], wqkv)


def _attn_block(x, q, k, v, p, num_heads, compute_dtype):
    N, D = x.shape
    tn = _pick_tile(N, _TOKEN_TILES)
    wproj = p["wproj"].astype(compute_dtype)
    kernel = partial(_attn_kernel, num_heads=num_heads, compute_dtype=compute_dtype)
    cost = pl.CostEstimate(flops=4 * N * N * D + 2 * N * D * D,
                           transcendentals=num_heads * N * N,
                           bytes_accessed=8 * N * D + 6 * N * D + 2 * D * D + 4 * D)
    # TODO(synk): K/V are kept fully VMEM-resident per call; very long token
    # counts would additionally need flash-style chunking over the KV axis.
    return pl.pallas_call(
        kernel,
        grid=(N // tn,),
        in_specs=[
            pl.BlockSpec((tn, D), lambda i: (i, 0)),         # x (residual)
            pl.BlockSpec((tn, D), lambda i: (i, 0)),         # q rows tile
            pl.BlockSpec((N, D), lambda i: (0, 0)),          # k (all tokens)
            pl.BlockSpec((N, D), lambda i: (0, 0)),          # v (all tokens)
            pl.BlockSpec((D, D), lambda i: (0, 0)),          # proj weight
            pl.BlockSpec((1, D), lambda i: (0, 0)),          # proj bias
        ],
        out_specs=pl.BlockSpec((tn, D), lambda i: (i, 0)),
        out_shape=jax.ShapeDtypeStruct((N, D), x.dtype),
        input_output_aliases={0: 0},
        compiler_params=_cparams(("parallel",)),
        cost_estimate=cost,
    )(x, q, k, v, wproj, p["bproj"])


def _mlp_block(x, p, final_g, final_b, compute_dtype, apply_final_ln):
    N, D = x.shape
    Dh = p["w1"].shape[1]
    tn = _pick_tile(N, _TOKEN_TILES)
    th = _pick_tile(Dh, _HIDDEN_TILES)
    w1 = p["w1"].astype(compute_dtype)
    w2 = p["w2"].astype(compute_dtype)
    kernel = partial(_mlp_kernel, apply_final_ln=apply_final_ln,
                     compute_dtype=compute_dtype)
    cost = pl.CostEstimate(flops=4 * N * D * Dh, transcendentals=N * Dh,
                           bytes_accessed=8 * N * D + 4 * D * Dh + 4 * (D + Dh))
    return pl.pallas_call(
        kernel,
        grid=(N // tn, Dh // th),
        in_specs=[
            pl.BlockSpec((tn, D), lambda i, j: (i, 0)),      # x (residual)
            pl.BlockSpec((1, D), lambda i, j: (0, 0)),       # ln2 gamma
            pl.BlockSpec((1, D), lambda i, j: (0, 0)),       # ln2 beta
            pl.BlockSpec((D, th), lambda i, j: (0, j)),      # fc1 weight chunk
            pl.BlockSpec((1, th), lambda i, j: (0, j)),      # fc1 bias chunk
            pl.BlockSpec((th, D), lambda i, j: (j, 0)),      # fc2 weight chunk
            pl.BlockSpec((1, D), lambda i, j: (0, 0)),       # fc2 bias
            pl.BlockSpec((1, D), lambda i, j: (0, 0)),       # final LN gamma
            pl.BlockSpec((1, D), lambda i, j: (0, 0)),       # final LN beta
        ],
        out_specs=pl.BlockSpec((tn, D), lambda i, j: (i, 0)),
        out_shape=jax.ShapeDtypeStruct((N, D), x.dtype),
        scratch_shapes=[pltpu.VMEM((tn, D), compute_dtype),   # cached LN2(x)
                        pltpu.VMEM((tn, D), jnp.float32)],    # residual accumulator
        input_output_aliases={0: 0},
        compiler_params=_cparams(("parallel", "arbitrary")),
        cost_estimate=cost,
    )(x, p["ln2_g"], p["ln2_b"], w1, p["b1"], w2, p["b2"], final_g, final_b)


def _final_layernorm(x, g, b):
    # only used for depth == 0 (otherwise fused into the last block's MLP kernel)
    N, D = x.shape
    tn = _pick_tile(N, _TOKEN_TILES)
    return pl.pallas_call(
        _ln_only_kernel,
        grid=(N // tn,),
        in_specs=[pl.BlockSpec((tn, D), lambda i: (i, 0)),
                  pl.BlockSpec((1, D), lambda i: (0, 0)),
                  pl.BlockSpec((1, D), lambda i: (0, 0))],
        out_specs=pl.BlockSpec((tn, D), lambda i: (i, 0)),
        out_shape=jax.ShapeDtypeStruct((N, D), x.dtype),
        input_output_aliases={0: 0},
        compiler_params=_cparams(("parallel",)),
    )(x, g, b)


# ------------------------------ parameters ---------------------------------
def init_params(key, depth, num_heads, embed_dim, mlp_ratio=4.0):
    D = embed_dim
    Dh = int(D * mlp_ratio)

    def tn(k, shape):   # trunc_normal_(std=0.02), deterministic synthetic init
        return 0.02 * jax.random.truncated_normal(k, -2.0, 2.0, shape, jnp.float32)

    blocks = []
    for i in range(depth):
        ks = jax.random.split(jax.random.fold_in(key, i), 4)
        qkv_w = tn(ks[0], (3 * D, D))   # torch Linear layout (out, in); qkv_bias=False
        proj_w = tn(ks[1], (D, D))
        fc1_w = tn(ks[2], (Dh, D))
        fc2_w = tn(ks[3], (D, Dh))
        blocks.append(dict(
            ln1_g=jnp.ones((1, D), jnp.float32), ln1_b=jnp.zeros((1, D), jnp.float32),
            wqkv=qkv_w.T,                                   # (D, 3D): columns [q|k|v]
            wproj=proj_w.T, bproj=jnp.zeros((1, D), jnp.float32),
            ln2_g=jnp.ones((1, D), jnp.float32), ln2_b=jnp.zeros((1, D), jnp.float32),
            w1=fc1_w.T, b1=jnp.zeros((1, Dh), jnp.float32),
            w2=fc2_w.T, b2=jnp.zeros((1, D), jnp.float32),
        ))
    norm = dict(g=jnp.ones((1, D), jnp.float32), b=jnp.zeros((1, D), jnp.float32))
    return blocks, norm


# ------------------------------ full forward --------------------------------
def group_token_transformer_encoder(fea, block_params, norm_params, num_heads,
                                    compute_dtype=jnp.bfloat16):
    bs, c, D = fea.shape
    x = fea.reshape(bs * c, D)                   # 'b c dim -> (b c) dim'
    depth = len(block_params)
    if depth == 0:
        x = _final_layernorm(x, norm_params["g"], norm_params["b"])
        return x.reshape(bs, c, D)
    for li, p in enumerate(block_params):
        q, k, v = _qkv_proj(x, p, num_heads, compute_dtype)
        x = _attn_block(x, q, k, v, p, num_heads, compute_dtype)
        x = _mlp_block(x, p, norm_params["g"], norm_params["b"], compute_dtype,
                       apply_final_ln=(li == depth - 1))
    return x.reshape(bs, c, D)                   # '(b c) dim -> b c dim'


# ------------------------------ plain-JAX reference --------------------------
def reference_forward(fea, block_params, norm_params, num_heads):
    bs, c, D = fea.shape
    x = fea.reshape(bs * c, D)
    hd = D // num_heads
    scale = hd ** -0.5

    def ln(y, g, b):
        mu = y.mean(-1, keepdims=True)
        var = ((y - mu) ** 2).mean(-1, keepdims=True)
        return (y - mu) / jnp.sqrt(var + LN_EPS) * g + b

    for p in block_params:
        N = x.shape[0]
        h = ln(x, p["ln1_g"], p["ln1_b"])
        q, k, v = jnp.split(h @ p["wqkv"], 3, axis=-1)
        q = q.reshape(N, num_heads, hd).transpose(1, 0, 2)
        k = k.reshape(N, num_heads, hd).transpose(1, 0, 2)
        v = v.reshape(N, num_heads, hd).transpose(1, 0, 2)
        s = jnp.einsum("hnd,hmd->hnm", q, k) * scale
        a = jax.nn.softmax(s, axis=-1)
        o = jnp.einsum("hnm,hmd->hnd", a, v).transpose(1, 0, 2).reshape(N, D)
        x = x + o @ p["wproj"] + p["bproj"]
        h = ln(x, p["ln2_g"], p["ln2_b"])
        h = jax.nn.gelu(h @ p["w1"] + p["b1"], approximate=False)
        x = x + h @ p["w2"] + p["b2"]
    x = ln(x, norm_params["g"], norm_params["b"])
    return x.reshape(bs, c, D)


# ------------------------------ main -----------------------------------------
if __name__ == "__main__":
    depth, num_heads, embed_dim = 2, 4, 32
    bs, c = 2, 4                                  # fea: (b, c, dim) = (2, 4, 32)

    key = jax.random.PRNGKey(0)
    pkey, xkey = jax.random.split(key)
    block_params, norm_params = init_params(pkey, depth, num_heads, embed_dim)
    fea = jax.random.normal(xkey, (bs, c, embed_dim), jnp.float32)

    fwd = jax.jit(partial(group_token_transformer_encoder, num_heads=num_heads))
    out = jax.block_until_ready(fwd(fea, block_params, norm_params))

    ref = reference_forward(fea, block_params, norm_params, num_heads)
    assert out.shape == (bs, c, embed_dim), out.shape
    assert jnp.allclose(out, ref, rtol=2e-2, atol=2e-2), float(jnp.max(jnp.abs(out - ref)))

    print("KERNEL_OK")
</pallas_src>

<mosaic_0001>
module attributes {stable_mosaic.version = 11 : i64} {
  func.func @_qkv_kernel(%arg0: i32, %arg1: memref<8x32xf32, #tpu.memory_space<vmem>>, %arg2: memref<1x32xf32, #tpu.memory_space<vmem>>, %arg3: memref<1x32xf32, #tpu.memory_space<vmem>>, %arg4: memref<32x96xbf16, #tpu.memory_space<vmem>>, %arg5: memref<8x32xbf16, #tpu.memory_space<vmem>>, %arg6: memref<8x32xbf16, #tpu.memory_space<vmem>>, %arg7: memref<8x32xbf16, #tpu.memory_space<vmem>>) attributes {dimension_semantics = [#tpu.dimension_semantics<parallel>], iteration_bounds = array<i64: 1>, scalar_prefetch = 0 : i64, scratch_operands = 0 : i64, tpu.core_type = #tpu.core_type<tc>, window_params = [{transform_indices = @transform_0, window_bounds = array<i64: 8, 32>}, {pipeline_mode = #tpu.pipeline_mode<synchronous>, transform_indices = @transform_1, window_bounds = array<i64: 1, 32>}, {pipeline_mode = #tpu.pipeline_mode<synchronous>, transform_indices = @transform_2, window_bounds = array<i64: 1, 32>}, {pipeline_mode = #tpu.pipeline_mode<synchronous>, transform_indices = @transform_3, window_bounds = array<i64: 32, 96>}, {transform_indices = @transform_4, window_bounds = array<i64: 8, 32>}, {transform_indices = @transform_5, window_bounds = array<i64: 8, 32>}, {transform_indices = @transform_6, window_bounds = array<i64: 8, 32>}]} {
    %c0 = arith.constant 0 : index
    %c0_0 = arith.constant 0 : index
    %0 = vector.load %arg1[%c0, %c0_0] : memref<8x32xf32, #tpu.memory_space<vmem>>, vector<8x32xf32>
    %c0_1 = arith.constant 0 : index
    %c0_2 = arith.constant 0 : index
    %1 = vector.load %arg2[%c0_1, %c0_2] : memref<1x32xf32, #tpu.memory_space<vmem>>, vector<1x32xf32>
    %c0_3 = arith.constant 0 : index
    %c0_4 = arith.constant 0 : index
    %2 = vector.load %arg3[%c0_3, %c0_4] : memref<1x32xf32, #tpu.memory_space<vmem>>, vector<1x32xf32>
    %cst = arith.constant dense<0.000000e+00> : vector<8xf32>
    %3 = vector.multi_reduction <add>, %0, %cst [1] : vector<8x32xf32> to vector<8xf32>
    %4 = vector.shape_cast %3 : vector<8xf32> to vector<8x1xf32>
    %cst_5 = arith.constant 3.200000e+01 : f32
    %5 = vector.broadcast %cst_5 : f32 to vector<8x1xf32>
    %6 = arith.divf %4, %5 : vector<8x1xf32>
    %7 = vector.broadcast %6 : vector<8x1xf32> to vector<8x32xf32>
    %8 = arith.subf %0, %7 : vector<8x32xf32>
    %9 = arith.mulf %8, %8 : vector<8x32xf32>
    %cst_6 = arith.constant dense<0.000000e+00> : vector<8xf32>
    %10 = vector.multi_reduction <add>, %9, %cst_6 [1] : vector<8x32xf32> to vector<8xf32>
    %11 = vector.shape_cast %10 : vector<8xf32> to vector<8x1xf32>
    %cst_7 = arith.constant 3.200000e+01 : f32
    %12 = vector.broadcast %cst_7 : f32 to vector<8x1xf32>
    %13 = arith.divf %11, %12 : vector<8x1xf32>
    %14 = vector.broadcast %6 : vector<8x1xf32> to vector<8x32xf32>
    %15 = arith.subf %0, %14 : vector<8x32xf32>
    %cst_8 = arith.constant 9.99999974E-6 : f32
    %16 = vector.broadcast %cst_8 : f32 to vector<8x1xf32>
    %17 = arith.addf %13, %16 : vector<8x1xf32>
    %18 = math.rsqrt %17 : vector<8x1xf32>
    %19 = vector.broadcast %18 : vector<8x1xf32> to vector<8x32xf32>
    %20 = arith.mulf %15, %19 : vector<8x32xf32>
    %21 = vector.broadcast %1 : vector<1x32xf32> to vector<8x32xf32>
    %22 = arith.mulf %20, %21 : vector<8x32xf32>
    %23 = vector.broadcast %2 : vector<1x32xf32> to vector<8x32xf32>
    %24 = arith.addf %22, %23 : vector<8x32xf32>
    %25 = arith.truncf %24 : vector<8x32xf32> to vector<8x32xbf16>
    %c0_9 = arith.constant 0 : index
    %c0_10 = arith.constant 0 : index
    %26 = vector.load %arg4[%c0_9, %c0_10] : memref<32x96xbf16, #tpu.memory_space<vmem>>, vector<32x96xbf16>
    %cst_11 = arith.constant dense<0.000000e+00> : vector<8x96xf32>
    %27 = tpu.matmul %25, %26, %cst_11 {dimension_numbers = #tpu.dot_dimension_numbers<[1], [0], [0], [1], [0, 0, 1, 1], [], []>} : vector<8x32xbf16>, vector<32x96xbf16>, vector<8x96xf32> -> vector<8x96xf32>
    %28 = vector.extract_strided_slice %27 {offsets = [0, 0], sizes = [8, 32], strides = [1, 1]} : vector<8x96xf32> to vector<8x32xf32>
    %cst_12 = arith.constant 0.353553385 : f32
    %29 = vector.broadcast %cst_12 : f32 to vector<8x32xf32>
    %30 = arith.mulf %28, %29 : vector<8x32xf32>
    %31 = arith.truncf %30 : vector<8x32xf32> to vector<8x32xbf16>
    %c0_13 = arith.constant 0 : index
    %c0_14 = arith.constant 0 : index
    %32 = vector.load %arg5[%c0_13, %c0_14] : memref<8x32xbf16, #tpu.memory_space<vmem>>, vector<8x32xbf16>
    tpu.vector_store %arg5[%c0_13, %c0_14], %31 {strides = array<i32>} : memref<8x32xbf16, #tpu.memory_space<vmem>>, vector<8x32xbf16>,
    %33 = vector.extract_strided_slice %27 {offsets = [0, 32], sizes = [8, 32], strides = [1, 1]} : vector<8x96xf32> to vector<8x32xf32>
    %34 = arith.truncf %33 : vector<8x32xf32> to vector<8x32xbf16>
    %c0_15 = arith.constant 0 : index
    %c0_16 = arith.constant 0 : index
    %35 = vector.load %arg6[%c0_15, %c0_16] : memref<8x32xbf16, #tpu.memory_space<vmem>>, vector<8x32xbf16>
    tpu.vector_store %arg6[%c0_15, %c0_16], %34 {strides = array<i32>} : memref<8x32xbf16, #tpu.memory_space<vmem>>, vector<8x32xbf16>,
    %36 = vector.extract_strided_slice %27 {offsets = [0, 64], sizes = [8, 32], strides = [1, 1]} : vector<8x96xf32> to vector<8x32xf32>
    %37 = arith.truncf %36 : vector<8x32xf32> to vector<8x32xbf16>
    %c0_17 = arith.constant 0 : index
    %c0_18 = arith.constant 0 : index
    %38 = vector.load %arg7[%c0_17, %c0_18] : memref<8x32xbf16, #tpu.memory_space<vmem>>, vector<8x32xbf16>
    tpu.vector_store %arg7[%c0_17, %c0_18], %37 {strides = array<i32>} : memref<8x32xbf16, #tpu.memory_space<vmem>>, vector<8x32xbf16>,
    return
  }
  func.func @transform_0(%arg0: i32) -> (i32, i32) {
    %c0_i32 = arith.constant 0 : i32
    %c0_i32_0 = arith.constant 0 : i32
    return %arg0, %c0_i32 : i32, i32
  }
  func.func @transform_1(%arg0: i32) -> (i32, i32) {
    %c0_i32 = arith.constant 0 : i32
    %c0_i32_0 = arith.constant 0 : i32
    %c0_i32_1 = arith.constant 0 : i32
    return %c0_i32, %c0_i32_0 : i32, i32
  }
  func.func @transform_2(%arg0: i32) -> (i32, i32) {
    %c0_i32 = arith.constant 0 : i32
    %c0_i32_0 = arith.constant 0 : i32
    %c0_i32_1 = arith.constant 0 : i32
    return %c0_i32, %c0_i32_0 : i32, i32
  }
  func.func @transform_3(%arg0: i32) -> (i32, i32) {
    %c0_i32 = arith.constant 0 : i32
    %c0_i32_0 = arith.constant 0 : i32
    %c0_i32_1 = arith.constant 0 : i32
    return %c0_i32, %c0_i32_0 : i32, i32
  }
  func.func @transform_4(%arg0: i32) -> (i32, i32) {
    %c0_i32 = arith.constant 0 : i32
    %c0_i32_0 = arith.constant 0 : i32
    return %arg0, %c0_i32 : i32, i32
  }
  func.func @transform_5(%arg0: i32) -> (i32, i32) {
    %c0_i32 = arith.constant 0 : i32
    %c0_i32_0 = arith.constant 0 : i32
    return %arg0, %c0_i32 : i32, i32
  }
  func.func @transform_6(%arg0: i32) -> (i32, i32) {
    %c0_i32 = arith.constant 0 : i32
    %c0_i32_0 = arith.constant 0 : i32
    return %arg0, %c0_i32 : i32, i32
  }
}

module attributes {stable_mosaic.version = 11 : i64} {
  func.func @_attn_kernel(%arg0: i32, %arg1: memref<8x32xf32, #tpu.memory_space<vmem>>, %arg2: memref<8x32xbf16, #tpu.memory_space<vmem>>, %arg3: memref<8x32xbf16, #tpu.memory_space<vmem>>, %arg4: memref<8x32xbf16, #tpu.memory_space<vmem>>, %arg5: memref<32x32xbf16, #tpu.memory_space<vmem>>, %arg6: memref<1x32xf32, #tpu.memory_space<vmem>>, %arg7: memref<8x32xf32, #tpu.memory_space<vmem>>) attributes {dimension_semantics = [#tpu.dimension_semantics<parallel>], iteration_bounds = array<i64: 1>, scalar_prefetch = 0 : i64, scratch_operands = 0 : i64, tpu.core_type = #tpu.core_type<tc>, window_params = [{transform_indices = @transform_0, window_bounds = array<i64: 8, 32>}, {transform_indices = @transform_1, window_bounds = array<i64: 8, 32>}, {pipeline_mode = #tpu.pipeline_mode<synchronous>, transform_indices = @transform_2, window_bounds = array<i64: 8, 32>}, {pipeline_mode = #tpu.pipeline_mode<synchronous>, transform_indices = @transform_3, window_bounds = array<i64: 8, 32>}, {pipeline_mode = #tpu.pipeline_mode<synchronous>, transform_indices = @transform_4, window_bounds = array<i64: 32, 32>}, {pipeline_mode = #tpu.pipeline_mode<synchronous>, transform_indices = @transform_5, window_bounds = array<i64: 1, 32>}, {transform_indices = @transform_6, window_bounds = array<i64: 8, 32>}]} {
    %c0 = arith.constant 0 : index
    %c0_0 = arith.constant 0 : index
    %0 = vector.load %arg1[%c0, %c0_0] : memref<8x32xf32, #tpu.memory_space<vmem>>, vector<8x32xf32>
    %c0_1 = arith.constant 0 : index
    %c0_2 = arith.constant 0 : index
    %1 = vector.load %arg2[%c0_1, %c0_2] : memref<8x32xbf16, #tpu.memory_space<vmem>>, vector<8x32xbf16>
    %2 = arith.extf %1 : vector<8x32xbf16> to vector<8x32xf32>
    %c0_3 = arith.constant 0 : index
    %c0_4 = arith.constant 0 : index
    %3 = vector.load %arg3[%c0_3, %c0_4] : memref<8x32xbf16, #tpu.memory_space<vmem>>, vector<8x32xbf16>
    %4 = arith.extf %3 : vector<8x32xbf16> to vector<8x32xf32>
    %c0_5 = arith.constant 0 : index
    %c0_6 = arith.constant 0 : index
    %5 = vector.load %arg4[%c0_5, %c0_6] : memref<8x32xbf16, #tpu.memory_space<vmem>>, vector<8x32xbf16>
    %6 = arith.extf %5 : vector<8x32xbf16> to vector<8x32xf32>
    %7 = vector.shape_cast %2 : vector<8x32xf32> to vector<8x4x8xf32>
    %8 = tpu.transpose %7, [1, 0, 2] : vector<8x4x8xf32> -> vector<4x8x8xf32>
    %9 = arith.truncf %8 : vector<4x8x8xf32> to vector<4x8x8xbf16>
    %10 = vector.shape_cast %4 : vector<8x32xf32> to vector<8x4x8xf32>
    %11 = tpu.transpose %10, [1, 0, 2] : vector<8x4x8xf32> -> vector<4x8x8xf32>
    %12 = arith.truncf %11 : vector<4x8x8xf32> to vector<4x8x8xbf16>
    %13 = vector.shape_cast %6 : vector<8x32xf32> to vector<8x4x8xf32>
    %14 = tpu.transpose %13, [1, 0, 2] : vector<8x4x8xf32> -> vector<4x8x8xf32>
    %15 = arith.truncf %14 : vector<4x8x8xf32> to vector<4x8x8xbf16>
    "tpu.trace_start"() <{level = 10 : i32, message = "hqd,hkd->hqk"}> : () -> ()
    %cst = arith.constant dense<0.000000e+00> : vector<4x8x8xf32>
    %16 = tpu.matmul %9, %12, %cst {dimension_numbers = #tpu.dot_dimension_numbers<[2], [2], [1], [1], [0, 0, 0, 1, 1, 1], [0], [0]>} : vector<4x8x8xbf16>, vector<4x8x8xbf16>, vector<4x8x8xf32> -> vector<4x8x8xf32>
    "tpu.trace_stop"() : () -> ()
    %cst_7 = arith.constant dense<0xFF800000> : vector<4x8xf32>
    %17 = vector.multi_reduction <maximumf>, %16, %cst_7 [2] : vector<4x8x8xf32> to vector<4x8xf32>
    %18 = vector.shape_cast %17 : vector<4x8xf32> to vector<4x8x1xf32>
    %19 = vector.broadcast %18 : vector<4x8x1xf32> to vector<4x8x8xf32>
    %20 = arith.subf %16, %19 : vector<4x8x8xf32>
    %21 = math.exp %20 : vector<4x8x8xf32>
    %cst_8 = arith.constant dense<0.000000e+00> : vector<4x8xf32>
    %22 = vector.multi_reduction <add>, %21, %cst_8 [2] : vector<4x8x8xf32> to vector<4x8xf32>
    %23 = vector.shape_cast %22 : vector<4x8xf32> to vector<4x8x1xf32>
    %24 = tpu.reciprocal %23 {approx = true} : vector<4x8x1xf32> -> vector<4x8x1xf32>
    %25 = vector.broadcast %24 : vector<4x8x1xf32> to vector<4x8x8xf32>
    %26 = arith.mulf %21, %25 : vector<4x8x8xf32>
    %27 = arith.truncf %26 : vector<4x8x8xf32> to vector<4x8x8xbf16>
    "tpu.trace_start"() <{level = 10 : i32, message = "hqk,hkd->hqd"}> : () -> ()
    %cst_9 = arith.constant dense<0.000000e+00> : vector<4x8x8xf32>
    %28 = tpu.matmul %27, %15, %cst_9 {dimension_numbers = #tpu.dot_dimension_numbers<[2], [1], [1], [2], [0, 0, 0, 1, 1, 2], [0], [0]>} : vector<4x8x8xbf16>, vector<4x8x8xbf16>, vector<4x8x8xf32> -> vector<4x8x8xf32>
    "tpu.trace_stop"() : () -> ()
    %29 = tpu.transpose %28, [1, 0, 2] : vector<4x8x8xf32> -> vector<8x4x8xf32>
    %30 = vector.shape_cast %29 : vector<8x4x8xf32> to vector<8x32xf32>
    %31 = arith.truncf %30 : vector<8x32xf32> to vector<8x32xbf16>
    %c0_10 = arith.constant 0 : index
    %c0_11 = arith.constant 0 : index
    %32 = vector.load %arg5[%c0_10, %c0_11] : memref<32x32xbf16, #tpu.memory_space<vmem>>, vector<32x32xbf16>
    %cst_12 = arith.constant dense<0.000000e+00> : vector<8x32xf32>
    %33 = tpu.matmul %31, %32, %cst_12 {dimension_numbers = #tpu.dot_dimension_numbers<[1], [0], [0], [1], [0, 0, 1, 1], [], []>} : vector<8x32xbf16>, vector<32x32xbf16>, vector<8x32xf32> -> vector<8x32xf32>
    %c0_13 = arith.constant 0 : index
    %c0_14 = arith.constant 0 : index
    %34 = vector.load %arg6[%c0_13, %c0_14] : memref<1x32xf32, #tpu.memory_space<vmem>>, vector<1x32xf32>
    %35 = vector.broadcast %34 : vector<1x32xf32> to vector<8x32xf32>
    %36 = arith.addf %33, %35 : vector<8x32xf32>
    %37 = arith.addf %0, %36 : vector<8x32xf32>
    %c0_15 = arith.constant 0 : index
    %c0_16 = arith.constant 0 : index
    %38 = vector.load %arg7[%c0_15, %c0_16] : memref<8x32xf32, #tpu.memory_space<vmem>>, vector<8x32xf32>
    tpu.vector_store %arg7[%c0_15, %c0_16], %37 {strides = array<i32>} : memref<8x32xf32, #tpu.memory_space<vmem>>, vector<8x32xf32>,
    return
  }
  func.func @transform_0(%arg0: i32) -> (i32, i32) {
    %c0_i32 = arith.constant 0 : i32
    %c0_i32_0 = arith.constant 0 : i32
    return %arg0, %c0_i32 : i32, i32
  }
  func.func @transform_1(%arg0: i32) -> (i32, i32) {
    %c0_i32 = arith.constant 0 : i32
    %c0_i32_0 = arith.constant 0 : i32
    return %arg0, %c0_i32 : i32, i32
  }
  func.func @transform_2(%arg0: i32) -> (i32, i32) {
    %c0_i32 = arith.constant 0 : i32
    %c0_i32_0 = arith.constant 0 : i32
    %c0_i32_1 = arith.constant 0 : i32
    return %c0_i32, %c0_i32_0 : i32, i32
  }
  func.func @transform_3(%arg0: i32) -> (i32, i32) {
    %c0_i32 = arith.constant 0 : i32
    %c0_i32_0 = arith.constant 0 : i32
    %c0_i32_1 = arith.constant 0 : i32
    return %c0_i32, %c0_i32_0 : i32, i32
  }
  func.func @transform_4(%arg0: i32) -> (i32, i32) {
    %c0_i32 = arith.constant 0 : i32
    %c0_i32_0 = arith.constant 0 : i32
    %c0_i32_1 = arith.constant 0 : i32
    return %c0_i32, %c0_i32_0 : i32, i32
  }
  func.func @transform_5(%arg0: i32) -> (i32, i32) {
    %c0_i32 = arith.constant 0 : i32
    %c0_i32_0 = arith.constant 0 : i32
    %c0_i32_1 = arith.constant 0 : i32
    return %c0_i32, %c0_i32_0 : i32, i32
  }
  func.func @transform_6(%arg0: i32) -> (i32, i32) {
    %c0_i32 = arith.constant 0 : i32
    %c0_i32_0 = arith.constant 0 : i32
    return %arg0, %c0_i32 : i32, i32
  }
}

module attributes {stable_mosaic.version = 11 : i64} {
  func.func @_mlp_kernel(%arg0: i32, %arg1: i32, %arg2: memref<8x32xf32, #tpu.memory_space<vmem>>, %arg3: memref<1x32xf32, #tpu.memory_space<vmem>>, %arg4: memref<1x32xf32, #tpu.memory_space<vmem>>, %arg5: memref<32x128xbf16, #tpu.memory_space<vmem>>, %arg6: memref<1x128xf32, #tpu.memory_space<vmem>>, %arg7: memref<128x32xbf16, #tpu.memory_space<vmem>>, %arg8: memref<1x32xf32, #tpu.memory_space<vmem>>, %arg9: memref<1x32xf32, #tpu.memory_space<vmem>>, %arg10: memref<1x32xf32, #tpu.memory_space<vmem>>, %arg11: memref<8x32xf32, #tpu.memory_space<vmem>>, %arg12: memref<8x32xbf16, #tpu.memory_space<vmem>>, %arg13: memref<8x32xf32, #tpu.memory_space<vmem>>) attributes {dimension_semantics = [#tpu.dimension_semantics<parallel>, #tpu.dimension_semantics<arbitrary>], iteration_bounds = array<i64: 1, 1>, scalar_prefetch = 0 : i64, scratch_operands = 2 : i64, tpu.core_type = #tpu.core_type<tc>, window_params = [{transform_indices = @transform_0, window_bounds = array<i64: 8, 32>}, {pipeline_mode = #tpu.pipeline_mode<synchronous>, transform_indices = @transform_1, window_bounds = array<i64: 1, 32>}, {pipeline_mode = #tpu.pipeline_mode<synchronous>, transform_indices = @transform_2, window_bounds = array<i64: 1, 32>}, {transform_indices = @transform_3, window_bounds = array<i64: 32, 128>}, {transform_indices = @transform_4, window_bounds = array<i64: 1, 128>}, {transform_indices = @transform_5, window_bounds = array<i64: 128, 32>}, {pipeline_mode = #tpu.pipeline_mode<synchronous>, transform_indices = @transform_6, window_bounds = array<i64: 1, 32>}, {pipeline_mode = #tpu.pipeline_mode<synchronous>, transform_indices = @transform_7, window_bounds = array<i64: 1, 32>}, {pipeline_mode = #tpu.pipeline_mode<synchronous>, transform_indices = @transform_8, window_bounds = array<i64: 1, 32>}, {transform_indices = @transform_9, window_bounds = array<i64: 8, 32>}]} {
    %c0_i32 = arith.constant 0 : i32
    %0 = arith.cmpi eq, %arg1, %c0_i32 : i32
    %1 = arith.extui %0 : i1 to i32
    %c0_i32_0 = arith.constant 0 : i32
    %2 = arith.cmpi ne, %1, %c0_i32_0 : i32
    scf.if %2 {
      %c0_18 = arith.constant 0 : index
      %c0_19 = arith.constant 0 : index
      %26 = vector.load %arg2[%c0_18, %c0_19] : memref<8x32xf32, #tpu.memory_space<vmem>>, vector<8x32xf32>
      %c0_20 = arith.constant 0 : index
      %c0_21 = arith.constant 0 : index
      %27 = vector.load %arg3[%c0_20, %c0_21] : memref<1x32xf32, #tpu.memory_space<vmem>>, vector<1x32xf32>
      %c0_22 = arith.constant 0 : index
      %c0_23 = arith.constant 0 : index
      %28 = vector.load %arg4[%c0_22, %c0_23] : memref<1x32xf32, #tpu.memory_space<vmem>>, vector<1x32xf32>
      %cst_24 = arith.constant dense<0.000000e+00> : vector<8xf32>
      %29 = vector.multi_reduction <add>, %26, %cst_24 [1] : vector<8x32xf32> to vector<8xf32>
      %30 = vector.shape_cast %29 : vector<8xf32> to vector<8x1xf32>
      %cst_25 = arith.constant 3.200000e+01 : f32
      %31 = vector.broadcast %cst_25 : f32 to vector<8x1xf32>
      %32 = arith.divf %30, %31 : vector<8x1xf32>
      %33 = vector.broadcast %32 : vector<8x1xf32> to vector<8x32xf32>
      %34 = arith.subf %26, %33 : vector<8x32xf32>
      %35 = arith.mulf %34, %34 : vector<8x32xf32>
      %cst_26 = arith.constant dense<0.000000e+00> : vector<8xf32>
      %36 = vector.multi_reduction <add>, %35, %cst_26 [1] : vector<8x32xf32> to vector<8xf32>
      %37 = vector.shape_cast %36 : vector<8xf32> to vector<8x1xf32>
      %cst_27 = arith.constant 3.200000e+01 : f32
      %38 = vector.broadcast %cst_27 : f32 to vector<8x1xf32>
      %39 = arith.divf %37, %38 : vector<8x1xf32>
      %40 = vector.broadcast %32 : vector<8x1xf32> to vector<8x32xf32>
      %41 = arith.subf %26, %40 : vector<8x32xf32>
      %cst_28 = arith.constant 9.99999974E-6 : f32
      %42 = vector.broadcast %cst_28 : f32 to vector<8x1xf32>
      %43 = arith.addf %39, %42 : vector<8x1xf32>
      %44 = math.rsqrt %43 : vector<8x1xf32>
      %45 = vector.broadcast %44 : vector<8x1xf32> to vector<8x32xf32>
      %46 = arith.mulf %41, %45 : vector<8x32xf32>
      %47 = vector.broadcast %27 : vector<1x32xf32> to vector<8x32xf32>
      %48 = arith.mulf %46, %47 : vector<8x32xf32>
      %49 = vector.broadcast %28 : vector<1x32xf32> to vector<8x32xf32>
      %50 = arith.addf %48, %49 : vector<8x32xf32>
      %51 = arith.truncf %50 : vector<8x32xf32> to vector<8x32xbf16>
      %c0_29 = arith.constant 0 : index
      %c0_30 = arith.constant 0 : index
      %52 = vector.load %arg12[%c0_29, %c0_30] : memref<8x32xbf16, #tpu.memory_space<vmem>>, vector<8x32xbf16>
      tpu.vector_store %arg12[%c0_29, %c0_30], %51 {strides = array<i32>} : memref<8x32xbf16, #tpu.memory_space<vmem>>, vector<8x32xbf16>,
      %c0_31 = arith.constant 0 : index
      %c0_32 = arith.constant 0 : index
      %53 = vector.load %arg8[%c0_31, %c0_32] : memref<1x32xf32, #tpu.memory_space<vmem>>, vector<1x32xf32>
      %54 = vector.broadcast %53 : vector<1x32xf32> to vector<8x32xf32>
      %55 = arith.addf %26, %54 : vector<8x32xf32>
      %c0_33 = arith.constant 0 : index
      %c0_34 = arith.constant 0 : index
      %56 = vector.load %arg13[%c0_33, %c0_34] : memref<8x32xf32, #tpu.memory_space<vmem>>, vector<8x32xf32>
      tpu.vector_store %arg13[%c0_33, %c0_34], %55 {strides = array<i32>} : memref<8x32xf32, #tpu.memory_space<vmem>>, vector<8x32xf32>,
    } else {
    }
    %c0 = arith.constant 0 : index
    %c0_1 = arith.constant 0 : index
    %3 = vector.load %arg12[%c0, %c0_1] : memref<8x32xbf16, #tpu.memory_space<vmem>>, vector<8x32xbf16>
    %c0_2 = arith.constant 0 : index
    %c0_3 = arith.constant 0 : index
    %4 = vector.load %arg5[%c0_2, %c0_3] : memref<32x128xbf16, #tpu.memory_space<vmem>>, vector<32x128xbf16>
    %cst = arith.constant dense<0.000000e+00> : vector<8x128xf32>
    %5 = tpu.matmul %3, %4, %cst {dimension_numbers = #tpu.dot_dimension_numbers<[1], [0], [0], [1], [0, 0, 1, 1], [], []>} : vector<8x32xbf16>, vector<32x128xbf16>, vector<8x128xf32> -> vector<8x128xf32>
    %c0_4 = arith.constant 0 : index
    %c0_5 = arith.constant 0 : index
    %6 = vector.load %arg6[%c0_4, %c0_5] : memref<1x128xf32, #tpu.memory_space<vmem>>, vector<1x128xf32>
    %7 = vector.broadcast %6 : vector<1x128xf32> to vector<8x128xf32>
    %8 = arith.addf %5, %7 : vector<8x128xf32>
    %cst_6 = arith.constant 5.000000e-01 : f32
    %9 = vector.broadcast %cst_6 : f32 to vector<8x128xf32>
    %10 = arith.mulf %9, %8 : vector<8x128xf32>
    %cst_7 = arith.constant 0.707106769 : f32
    %11 = vector.broadcast %cst_7 : f32 to vector<8x128xf32>
    %12 = arith.mulf %8, %11 : vector<8x128xf32>
    %13 = math.erf %12 : vector<8x128xf32>
    %cst_8 = arith.constant 1.000000e+00 : f32
    %14 = vector.broadcast %cst_8 : f32 to vector<8x128xf32>
    %15 = arith.addf %14, %13 : vector<8x128xf32>
    %16 = arith.mulf %10, %15 : vector<8x128xf32>
    %c0_9 = arith.constant 0 : index
    %c0_10 = arith.constant 0 : index
    %17 = vector.load %arg13[%c0_9, %c0_10] : memref<8x32xf32, #tpu.memory_space<vmem>>, vector<8x32xf32>
    %18 = arith.truncf %16 : vector<8x128xf32> to vector<8x128xbf16>
    %c0_11 = arith.constant 0 : index
    %c0_12 = arith.constant 0 : index
    %19 = vector.load %arg7[%c0_11, %c0_12] : memref<128x32xbf16, #tpu.memory_space<vmem>>, vector<128x32xbf16>
    %cst_13 = arith.constant dense<0.000000e+00> : vector<8x32xf32>
    %20 = tpu.matmul %18, %19, %cst_13 {dimension_numbers = #tpu.dot_dimension_numbers<[1], [0], [0], [1], [0, 0, 1, 1], [], []>} : vector<8x128xbf16>, vector<128x32xbf16>, vector<8x32xf32> -> vector<8x32xf32>
    %21 = arith.addf %17, %20 : vector<8x32xf32>
    %c0_14 = arith.constant 0 : index
    %c0_15 = arith.constant 0 : index
    %22 = vector.load %arg13[%c0_14, %c0_15] : memref<8x32xf32, #tpu.memory_space<vmem>>, vector<8x32xf32>
    tpu.vector_store %arg13[%c0_14, %c0_15], %21 {strides = array<i32>} : memref<8x32xf32, #tpu.memory_space<vmem>>, vector<8x32xf32>,
    %c0_i32_16 = arith.constant 0 : i32
    %23 = arith.cmpi eq, %arg1, %c0_i32_16 : i32
    %24 = arith.extui %23 : i1 to i32
    %c0_i32_17 = arith.constant 0 : i32
    %25 = arith.cmpi ne, %24, %c0_i32_17 : i32
    scf.if %25 {
      %c0_18 = arith.constant 0 : index
      %c0_19 = arith.constant 0 : index
      %26 = vector.load %arg13[%c0_18, %c0_19] : memref<8x32xf32, #tpu.memory_space<vmem>>, vector<8x32xf32>
      %c0_20 = arith.constant 0 : index
      %c0_21 = arith.constant 0 : index
      %27 = vector.load %arg11[%c0_20, %c0_21] : memref<8x32xf32, #tpu.memory_space<vmem>>, vector<8x32xf32>
      tpu.vector_store %arg11[%c0_20, %c0_21], %26 {strides = array<i32>} : memref<8x32xf32, #tpu.memory_space<vmem>>, vector<8x32xf32>,
    } else {
    }
    return
  }
  func.func @transform_0(%arg0: i32, %arg1: i32) -> (i32, i32) {
    %c0_i32 = arith.constant 0 : i32
    %c0_i32_0 = arith.constant 0 : i32
    return %arg0, %c0_i32 : i32, i32
  }
  func.func @transform_1(%arg0: i32, %arg1: i32) -> (i32, i32) {
    %c0_i32 = arith.constant 0 : i32
    %c0_i32_0 = arith.constant 0 : i32
    %c0_i32_1 = arith.constant 0 : i32
    return %c0_i32, %c0_i32_0 : i32, i32
  }
  func.func @transform_2(%arg0: i32, %arg1: i32) -> (i32, i32) {
    %c0_i32 = arith.constant 0 : i32
    %c0_i32_0 = arith.constant 0 : i32
    %c0_i32_1 = arith.constant 0 : i32
    return %c0_i32, %c0_i32_0 : i32, i32
  }
  func.func @transform_3(%arg0: i32, %arg1: i32) -> (i32, i32) {
    %c0_i32 = arith.constant 0 : i32
    %c0_i32_0 = arith.constant 0 : i32
    return %c0_i32, %arg1 : i32, i32
  }
  func.func @transform_4(%arg0: i32, %arg1: i32) -> (i32, i32) {
    %c0_i32 = arith.constant 0 : i32
    %c0_i32_0 = arith.constant 0 : i32
    return %c0_i32, %arg1 : i32, i32
  }
  func.func @transform_5(%arg0: i32, %arg1: i32) -> (i32, i32) {
    %c0_i32 = arith.constant 0 : i32
    %c0_i32_0 = arith.constant 0 : i32
    return %arg1, %c0_i32 : i32, i32
  }
  func.func @transform_6(%arg0: i32, %arg1: i32) -> (i32, i32) {
    %c0_i32 = arith.constant 0 : i32
    %c0_i32_0 = arith.constant 0 : i32
    %c0_i32_1 = arith.constant 0 : i32
    return %c0_i32, %c0_i32_0 : i32, i32
  }
  func.func @transform_7(%arg0: i32, %arg1: i32) -> (i32, i32) {
    %c0_i32 = arith.constant 0 : i32
    %c0_i32_0 = arith.constant 0 : i32
    %c0_i32_1 = arith.constant 0 : i32
    return %c0_i32, %c0_i32_0 : i32, i32
  }
  func.func @transform_8(%arg0: i32, %arg1: i32) -> (i32, i32) {
    %c0_i32 = arith.constant 0 : i32
    %c0_i32_0 = arith.constant 0 : i32
    %c0_i32_1 = arith.constant 0 : i32
    return %c0_i32, %c0_i32_0 : i32, i32
  }
  func.func @transform_9(%arg0: i32, %arg1: i32) -> (i32, i32) {
    %c0_i32 = arith.constant 0 : i32
    %c0_i32_0 = arith.constant 0 : i32
    return %arg0, %c0_i32 : i32, i32
  }
}

module attributes {stable_mosaic.version = 11 : i64} {
  func.func @_mlp_kernel(%arg0: i32, %arg1: i32, %arg2: memref<8x32xf32, #tpu.memory_space<vmem>>, %arg3: memref<1x32xf32, #tpu.memory_space<vmem>>, %arg4: memref<1x32xf32, #tpu.memory_space<vmem>>, %arg5: memref<32x128xbf16, #tpu.memory_space<vmem>>, %arg6: memref<1x128xf32, #tpu.memory_space<vmem>>, %arg7: memref<128x32xbf16, #tpu.memory_space<vmem>>, %arg8: memref<1x32xf32, #tpu.memory_space<vmem>>, %arg9: memref<1x32xf32, #tpu.memory_space<vmem>>, %arg10: memref<1x32xf32, #tpu.memory_space<vmem>>, %arg11: memref<8x32xf32, #tpu.memory_space<vmem>>, %arg12: memref<8x32xbf16, #tpu.memory_space<vmem>>, %arg13: memref<8x32xf32, #tpu.memory_space<vmem>>) attributes {dimension_semantics = [#tpu.dimension_semantics<parallel>, #tpu.dimension_semantics<arbitrary>], iteration_bounds = array<i64: 1, 1>, scalar_prefetch = 0 : i64, scratch_operands = 2 : i64, tpu.core_type = #tpu.core_type<tc>, window_params = [{transform_indices = @transform_0, window_bounds = array<i64: 8, 32>}, {pipeline_mode = #tpu.pipeline_mode<synchronous>, transform_indices = @transform_1, window_bounds = array<i64: 1, 32>}, {pipeline_mode = #tpu.pipeline_mode<synchronous>, transform_indices = @transform_2, window_bounds = array<i64: 1, 32>}, {transform_indices = @transform_3, window_bounds = array<i64: 32, 128>}, {transform_indices = @transform_4, window_bounds = array<i64: 1, 128>}, {transform_indices = @transform_5, window_bounds = array<i64: 128, 32>}, {pipeline_mode = #tpu.pipeline_mode<synchronous>, transform_indices = @transform_6, window_bounds = array<i64: 1, 32>}, {pipeline_mode = #tpu.pipeline_mode<synchronous>, transform_indices = @transform_7, window_bounds = array<i64: 1, 32>}, {pipeline_mode = #tpu.pipeline_mode<synchronous>, transform_indices = @transform_8, window_bounds = array<i64: 1, 32>}, {transform_indices = @transform_9, window_bounds = array<i64: 8, 32>}]} {
    %c0_i32 = arith.constant 0 : i32
    %0 = arith.cmpi eq, %arg1, %c0_i32 : i32
    %1 = arith.extui %0 : i1 to i32
    %c0_i32_0 = arith.constant 0 : i32
    %2 = arith.cmpi ne, %1, %c0_i32_0 : i32
    scf.if %2 {
      %c0_18 = arith.constant 0 : index
      %c0_19 = arith.constant 0 : index
      %26 = vector.load %arg2[%c0_18, %c0_19] : memref<8x32xf32, #tpu.memory_space<vmem>>, vector<8x32xf32>
      %c0_20 = arith.constant 0 : index
      %c0_21 = arith.constant 0 : index
      %27 = vector.load %arg3[%c0_20, %c0_21] : memref<1x32xf32, #tpu.memory_space<vmem>>, vector<1x32xf32>
      %c0_22 = arith.constant 0 : index
      %c0_23 = arith.constant 0 : index
      %28 = vector.load %arg4[%c0_22, %c0_23] : memref<1x32xf32, #tpu.memory_space<vmem>>, vector<1x32xf32>
      %cst_24 = arith.constant dense<0.000000e+00> : vector<8xf32>
      %29 = vector.multi_reduction <add>, %26, %cst_24 [1] : vector<8x32xf32> to vector<8xf32>
      %30 = vector.shape_cast %29 : vector<8xf32> to vector<8x1xf32>
      %cst_25 = arith.constant 3.200000e+01 : f32
      %31 = vector.broadcast %cst_25 : f32 to vector<8x1xf32>
      %32 = arith.divf %30, %31 : vector<8x1xf32>
      %33 = vector.broadcast %32 : vector<8x1xf32> to vector<8x32xf32>
      %34 = arith.subf %26, %33 : vector<8x32xf32>
      %35 = arith.mulf %34, %34 : vector<8x32xf32>
      %cst_26 = arith.constant dense<0.000000e+00> : vector<8xf32>
      %36 = vector.multi_reduction <add>, %35, %cst_26 [1] : vector<8x32xf32> to vector<8xf32>
      %37 = vector.shape_cast %36 : vector<8xf32> to vector<8x1xf32>
      %cst_27 = arith.constant 3.200000e+01 : f32
      %38 = vector.broadcast %cst_27 : f32 to vector<8x1xf32>
      %39 = arith.divf %37, %38 : vector<8x1xf32>
      %40 = vector.broadcast %32 : vector<8x1xf32> to vector<8x32xf32>
      %41 = arith.subf %26, %40 : vector<8x32xf32>
      %cst_28 = arith.constant 9.99999974E-6 : f32
      %42 = vector.broadcast %cst_28 : f32 to vector<8x1xf32>
      %43 = arith.addf %39, %42 : vector<8x1xf32>
      %44 = math.rsqrt %43 : vector<8x1xf32>
      %45 = vector.broadcast %44 : vector<8x1xf32> to vector<8x32xf32>
      %46 = arith.mulf %41, %45 : vector<8x32xf32>
      %47 = vector.broadcast %27 : vector<1x32xf32> to vector<8x32xf32>
      %48 = arith.mulf %46, %47 : vector<8x32xf32>
      %49 = vector.broadcast %28 : vector<1x32xf32> to vector<8x32xf32>
      %50 = arith.addf %48, %49 : vector<8x32xf32>
      %51 = arith.truncf %50 : vector<8x32xf32> to vector<8x32xbf16>
      %c0_29 = arith.constant 0 : index
      %c0_30 = arith.constant 0 : index
      %52 = vector.load %arg12[%c0_29, %c0_30] : memref<8x32xbf16, #tpu.memory_space<vmem>>, vector<8x32xbf16>
      tpu.vector_store %arg12[%c0_29, %c0_30], %51 {strides = array<i32>} : memref<8x32xbf16, #tpu.memory_space<vmem>>, vector<8x32xbf16>,
      %c0_31 = arith.constant 0 : index
      %c0_32 = arith.constant 0 : index
      %53 = vector.load %arg8[%c0_31, %c0_32] : memref<1x32xf32, #tpu.memory_space<vmem>>, vector<1x32xf32>
      %54 = vector.broadcast %53 : vector<1x32xf32> to vector<8x32xf32>
      %55 = arith.addf %26, %54 : vector<8x32xf32>
      %c0_33 = arith.constant 0 : index
      %c0_34 = arith.constant 0 : index
      %56 = vector.load %arg13[%c0_33, %c0_34] : memref<8x32xf32, #tpu.memory_space<vmem>>, vector<8x32xf32>
      tpu.vector_store %arg13[%c0_33, %c0_34], %55 {strides = array<i32>} : memref<8x32xf32, #tpu.memory_space<vmem>>, vector<8x32xf32>,
    } else {
    }
    %c0 = arith.constant 0 : index
    %c0_1 = arith.constant 0 : index
    %3 = vector.load %arg12[%c0, %c0_1] : memref<8x32xbf16, #tpu.memory_space<vmem>>, vector<8x32xbf16>
    %c0_2 = arith.constant 0 : index
    %c0_3 = arith.constant 0 : index
    %4 = vector.load %arg5[%c0_2, %c0_3] : memref<32x128xbf16, #tpu.memory_space<vmem>>, vector<32x128xbf16>
    %cst = arith.constant dense<0.000000e+00> : vector<8x128xf32>
    %5 = tpu.matmul %3, %4, %cst {dimension_numbers = #tpu.dot_dimension_numbers<[1], [0], [0], [1], [0, 0, 1, 1], [], []>} : vector<8x32xbf16>, vector<32x128xbf16>, vector<8x128xf32> -> vector<8x128xf32>
    %c0_4 = arith.constant 0 : index
    %c0_5 = arith.constant 0 : index
    %6 = vector.load %arg6[%c0_4, %c0_5] : memref<1x128xf32, #tpu.memory_space<vmem>>, vector<1x128xf32>
    %7 = vector.broadcast %6 : vector<1x128xf32> to vector<8x128xf32>
    %8 = arith.addf %5, %7 : vector<8x128xf32>
    %cst_6 = arith.constant 5.000000e-01 : f32
    %9 = vector.broadcast %cst_6 : f32 to vector<8x128xf32>
    %10 = arith.mulf %9, %8 : vector<8x128xf32>
    %cst_7 = arith.constant 0.707106769 : f32
    %11 = vector.broadcast %cst_7 : f32 to vector<8x128xf32>
    %12 = arith.mulf %8, %11 : vector<8x128xf32>
    %13 = math.erf %12 : vector<8x128xf32>
    %cst_8 = arith.constant 1.000000e+00 : f32
    %14 = vector.broadcast %cst_8 : f32 to vector<8x128xf32>
    %15 = arith.addf %14, %13 : vector<8x128xf32>
    %16 = arith.mulf %10, %15 : vector<8x128xf32>
    %c0_9 = arith.constant 0 : index
    %c0_10 = arith.constant 0 : index
    %17 = vector.load %arg13[%c0_9, %c0_10] : memref<8x32xf32, #tpu.memory_space<vmem>>, vector<8x32xf32>
    %18 = arith.truncf %16 : vector<8x128xf32> to vector<8x128xbf16>
    %c0_11 = arith.constant 0 : index
    %c0_12 = arith.constant 0 : index
    %19 = vector.load %arg7[%c0_11, %c0_12] : memref<128x32xbf16, #tpu.memory_space<vmem>>, vector<128x32xbf16>
    %cst_13 = arith.constant dense<0.000000e+00> : vector<8x32xf32>
    %20 = tpu.matmul %18, %19, %cst_13 {dimension_numbers = #tpu.dot_dimension_numbers<[1], [0], [0], [1], [0, 0, 1, 1], [], []>} : vector<8x128xbf16>, vector<128x32xbf16>, vector<8x32xf32> -> vector<8x32xf32>
    %21 = arith.addf %17, %20 : vector<8x32xf32>
    %c0_14 = arith.constant 0 : index
    %c0_15 = arith.constant 0 : index
    %22 = vector.load %arg13[%c0_14, %c0_15] : memref<8x32xf32, #tpu.memory_space<vmem>>, vector<8x32xf32>
    tpu.vector_store %arg13[%c0_14, %c0_15], %21 {strides = array<i32>} : memref<8x32xf32, #tpu.memory_space<vmem>>, vector<8x32xf32>,
    %c0_i32_16 = arith.constant 0 : i32
    %23 = arith.cmpi eq, %arg1, %c0_i32_16 : i32
    %24 = arith.extui %23 : i1 to i32
    %c0_i32_17 = arith.constant 0 : i32
    %25 = arith.cmpi ne, %24, %c0_i32_17 : i32
    scf.if %25 {
      %c0_18 = arith.constant 0 : index
      %c0_19 = arith.constant 0 : index
      %26 = vector.load %arg13[%c0_18, %c0_19] : memref<8x32xf32, #tpu.memory_space<vmem>>, vector<8x32xf32>
      %c0_20 = arith.constant 0 : index
      %c0_21 = arith.constant 0 : index
      %27 = vector.load %arg9[%c0_20, %c0_21] : memref<1x32xf32, #tpu.memory_space<vmem>>, vector<1x32xf32>
      %c0_22 = arith.constant 0 : index
      %c0_23 = arith.constant 0 : index
      %28 = vector.load %arg10[%c0_22, %c0_23] : memref<1x32xf32, #tpu.memory_space<vmem>>, vector<1x32xf32>
      %cst_24 = arith.constant dense<0.000000e+00> : vector<8xf32>
      %29 = vector.multi_reduction <add>, %26, %cst_24 [1] : vector<8x32xf32> to vector<8xf32>
      %30 = vector.shape_cast %29 : vector<8xf32> to vector<8x1xf32>
      %cst_25 = arith.constant 3.200000e+01 : f32
      %31 = vector.broadcast %cst_25 : f32 to vector<8x1xf32>
      %32 = arith.divf %30, %31 : vector<8x1xf32>
      %33 = vector.broadcast %32 : vector<8x1xf32> to vector<8x32xf32>
      %34 = arith.subf %26, %33 : vector<8x32xf32>
      %35 = arith.mulf %34, %34 : vector<8x32xf32>
      %cst_26 = arith.constant dense<0.000000e+00> : vector<8xf32>
      %36 = vector.multi_reduction <add>, %35, %cst_26 [1] : vector<8x32xf32> to vector<8xf32>
      %37 = vector.shape_cast %36 : vector<8xf32> to vector<8x1xf32>
      %cst_27 = arith.constant 3.200000e+01 : f32
      %38 = vector.broadcast %cst_27 : f32 to vector<8x1xf32>
      %39 = arith.divf %37, %38 : vector<8x1xf32>
      %40 = vector.broadcast %32 : vector<8x1xf32> to vector<8x32xf32>
      %41 = arith.subf %26, %40 : vector<8x32xf32>
      %cst_28 = arith.constant 9.99999974E-6 : f32
      %42 = vector.broadcast %cst_28 : f32 to vector<8x1xf32>
      %43 = arith.addf %39, %42 : vector<8x1xf32>
      %44 = math.rsqrt %43 : vector<8x1xf32>
      %45 = vector.broadcast %44 : vector<8x1xf32> to vector<8x32xf32>
      %46 = arith.mulf %41, %45 : vector<8x32xf32>
      %47 = vector.broadcast %27 : vector<1x32xf32> to vector<8x32xf32>
      %48 = arith.mulf %46, %47 : vector<8x32xf32>
      %49 = vector.broadcast %28 : vector<1x32xf32> to vector<8x32xf32>
      %50 = arith.addf %48, %49 : vector<8x32xf32>
      %c0_29 = arith.constant 0 : index
      %c0_30 = arith.constant 0 : index
      %51 = vector.load %arg11[%c0_29, %c0_30] : memref<8x32xf32, #tpu.memory_space<vmem>>, vector<8x32xf32>
      tpu.vector_store %arg11[%c0_29, %c0_30], %50 {strides = array<i32>} : memref<8x32xf32, #tpu.memory_space<vmem>>, vector<8x32xf32>,
    } else {
    }
    return
  }
  func.func @transform_0(%arg0: i32, %arg1: i32) -> (i32, i32) {
    %c0_i32 = arith.constant 0 : i32
    %c0_i32_0 = arith.constant 0 : i32
    return %arg0, %c0_i32 : i32, i32
  }
  func.func @transform_1(%arg0: i32, %arg1: i32) -> (i32, i32) {
    %c0_i32 = arith.constant 0 : i32
    %c0_i32_0 = arith.constant 0 : i32
    %c0_i32_1 = arith.constant 0 : i32
    return %c0_i32, %c0_i32_0 : i32, i32
  }
  func.func @transform_2(%arg0: i32, %arg1: i32) -> (i32, i32) {
    %c0_i32 = arith.constant 0 : i32
    %c0_i32_0 = arith.constant 0 : i32
    %c0_i32_1 = arith.constant 0 : i32
    return %c0_i32, %c0_i32_0 : i32, i32
  }
  func.func @transform_3(%arg0: i32, %arg1: i32) -> (i32, i32) {
    %c0_i32 = arith.constant 0 : i32
    %c0_i32_0 = arith.constant 0 : i32
    return %c0_i32, %arg1 : i32, i32
  }
  func.func @transform_4(%arg0: i32, %arg1: i32) -> (i32, i32) {
    %c0_i32 = arith.constant 0 : i32
    %c0_i32_0 = arith.constant 0 : i32
    return %c0_i32, %arg1 : i32, i32
  }
  func.func @transform_5(%arg0: i32, %arg1: i32) -> (i32, i32) {
    %c0_i32 = arith.constant 0 : i32
    %c0_i32_0 = arith.constant 0 : i32
    return %arg1, %c0_i32 : i32, i32
  }
  func.func @transform_6(%arg0: i32, %arg1: i32) -> (i32, i32) {
    %c0_i32 = arith.constant 0 : i32
    %c0_i32_0 = arith.constant 0 : i32
    %c0_i32_1 = arith.constant 0 : i32
    return %c0_i32, %c0_i32_0 : i32, i32
  }
  func.func @transform_7(%arg0: i32, %arg1: i32) -> (i32, i32) {
    %c0_i32 = arith.constant 0 : i32
    %c0_i32_0 = arith.constant 0 : i32
    %c0_i32_1 = arith.constant 0 : i32
    return %c0_i32, %c0_i32_0 : i32, i32
  }
  func.func @transform_8(%arg0: i32, %arg1: i32) -> (i32, i32) {
    %c0_i32 = arith.constant 0 : i32
    %c0_i32_0 = arith.constant 0 : i32
    %c0_i32_1 = arith.constant 0 : i32
    return %c0_i32, %c0_i32_0 : i32, i32
  }
  func.func @transform_9(%arg0: i32, %arg1: i32) -> (i32, i32) {
    %c0_i32 = arith.constant 0 : i32
    %c0_i32_0 = arith.constant 0 : i32
    return %arg0, %c0_i32 : i32, i32
  }
}

</mosaic_0001>

<llo_original>
// kernel: group_token_transformer_encoder.6
$region0: #{group_token_transformer_encoder.6}
  #allocation0 [shape = 'u32[]', space=smem, size = 0x4, offset = 0x4, fixed_abs, tag = 'smem constant byte address 0x4 - core index']
  #allocation1 [shape = 'u32[144,128]{1,0:T(1,128)}', space=vmem, size = 0x12000, scoped, tag = 'internal scratch']
  %s0 = inlined_call_operand.vmem [shape: f32[8,32], index: 0, kind: input, shape index: {}]
  %s1 = inlined_call_operand.vmem [shape: f32[1,32], index: 1, kind: input, shape index: {}]
  %s2 = inlined_call_operand.vmem [shape: f32[1,32], index: 2, kind: input, shape index: {}]
  %s3 = inlined_call_operand.vmem [shape: bf16[32,96], index: 3, kind: input, shape index: {}]
  %s4 = inlined_call_operand.vmem [shape: bf16[8,32], index: 4, kind: output, shape index: {0}]
  %s5 = inlined_call_operand.vmem [shape: bf16[8,32], index: 5, kind: output, shape index: {1}]
  %s6 = inlined_call_operand.vmem [shape: bf16[8,32], index: 6, kind: output, shape index: {2}]
  %7 = xla_tuple %s4, %s5, %s6
  %s8 = sld [smem:[#allocation0]]
  $region42: #{group_token_transformer_encoder.6} parent=0
    _
  %s10 = ssub.s32 1, %s8
  %s11 = scalar_select 0, %s10, %s8
  // Predicated region
  $region2: #{group_token_transformer_encoder.6} parent=0 // pred_check
    _
  $region3: #{group_token_transformer_encoder.6} parent=0 // pred_check_branch
    %13 = sbr.rel (0) target = $region5
  $region4: #{group_token_transformer_encoder.6} parent=0 // pred_region
    _
  $region5: #{group_token_transformer_encoder.6} parent=0 // pred_fallthru
    _
  // Predicated region
  $region6: #{group_token_transformer_encoder.6} parent=0 // pred_check
    _
  $region7: #{group_token_transformer_encoder.6} parent=0 // pred_check_branch
    %15 = sbr.rel (0) target = $region9
  $region8: #{group_token_transformer_encoder.6} parent=0 // pred_region
    _
  $region9: #{group_token_transformer_encoder.6} parent=0 // pred_fallthru
    _
  // Predicated region
  $region10: #{group_token_transformer_encoder.6} parent=0 // pred_check
    _
  $region11: #{group_token_transformer_encoder.6} parent=0 // pred_check_branch
    %17 = sbr.rel (0) target = $region13
  $region12: #{group_token_transformer_encoder.6} parent=0 // pred_region
    _
  $region13: #{group_token_transformer_encoder.6} parent=0 // pred_fallthru
    _
  // Predicated region
  $region14: #{group_token_transformer_encoder.6} parent=0 // pred_check
    _
  $region15: #{group_token_transformer_encoder.6} parent=0 // pred_check_branch
    %19 = sbr.rel (0) target = $region17
  $region16: #{group_token_transformer_encoder.6} parent=0 // pred_region
    _
  $region17: #{group_token_transformer_encoder.6} parent=0 // pred_fallthru
    _
  %v21 = vld [vmem:[%s0] sm:$0xff]
  %v22 = vld [vmem:[%s1] sm:$0x1]
  %v23 = vld [vmem:[%s2] sm:$0x1]
  %vm24 = vcmask 261120
  %v25 = vsel %vm24, %v21, 0.0
  %26 = vadd.xlane.f32.xlu0 %v25
  %v27 = vpop.xlane.xlu0 %26
  %v28 = vrcp.pop 32.0
  %v29 = vmul.f32 %v27, %v28
  %v30 = vsub.f32 %v21, %v29
  %v31 = vmul.f32 %v30, %v30
  %v32 = vsel %vm24, %v31, 0.0
  %33 = vadd.xlane.f32.xlu0 %v32
  %v34 = vpop.xlane.xlu0 %33
  %v35 = vmul.f32 %v34, %v28
  %v36 = vadd.f32 %v35, 1e-05
  %v37 = vrsqrt.pop %v36
  %v38 = vmul.f32 %v30, %v37
  %v40 = vlaneseq
  %v41 = vshrl.u32 %v40, 7
  %v42 = vsub.s32 0, %v41
  %v43 = vrot.slane %v22, %v42
  %v45 = vmul.f32 %v38, %v43
  %v47 = vlaneseq
  %v48 = vshrl.u32 %v47, 7
  %v49 = vsub.s32 0, %v48
  %v50 = vrot.slane %v23, %v49
  %v52 = vadd.f32 %v45, %v50
  %v53 = vpack.c.bf16 %v52, %v52
  %v54 = vld [vmem:[%s3] sm:$0xf]
  %v55 = vld [vmem:[%s3 + $0x4] sm:$0xf]
  %v56 = vld [vmem:[%s3 + $0x8] sm:$0xf]
  %v57 = vld [vmem:[%s3 + $0xc] sm:$0xf]
  %v62 = vunpack.c.l.b16 %v54
  %v63 = vunpack.c.l.b16 %v55
  %v64 = vunpack.c.l.b16 %v56
  %v65 = vunpack.c.l.b16 %v57
  %v66 = vpack.c.b16 %v63, %v62
  %v67 = vpack.c.b16 %v65, %v64
  %v71 = vsel %vm24, %v53, 0
  %73 = vmatprep.subr.bf16.mxu0 0
  %74 = vmatpush1.bf16.msra.mxu0 0
  %75 = vmatprep.subr.bf16.mxu0 0
  %76 = vmatpush1.bf16.msra.mxu0 0
  %77 = vmatprep.subr.bf16.mxu0 0
  %78 = vmatpush1.bf16.msra.mxu0 0
  %79 = vmatprep.subr.bf16.mxu0 0
  %80 = vmatpush1.bf16.msra.mxu0 0
  %81 = vmatprep.subr.bf16.mxu0 0
  %82 = vmatpush1.bf16.msra.mxu0 0
  %83 = vmatprep.subr.bf16.mxu0 0
  %84 = vmatpush1.bf16.msra.mxu0 0
  %85 = vmatprep.subr.bf16.mxu0 0
  %86 = vmatpush1.bf16.msra.mxu0 %v67
  %87 = vmatprep.subr.bf16.mxu0 0
  %88 = vmatpush1.bf16.msra.mxu0 %v66
  %89 = vmatprep.subr.bf16.mxu0 0
  %90 = vmatpush2.bf16.msra.mxu0 0
  %91 = vmatprep.subr.bf16.mxu0 0
  %92 = vmatpush2.bf16.msra.mxu0 0
  %93 = vmatprep.subr.bf16.mxu0 0
  %94 = vmatpush2.bf16.msra.mxu0 0
  %95 = vmatprep.subr.bf16.mxu0 0
  %96 = vmatpush2.bf16.msra.mxu0 0
  %97 = vmatprep.subr.bf16.mxu0 0
  %98 = vmatpush2.bf16.msra.mxu0 0
  %99 = vmatprep.subr.bf16.mxu0 0
  %100 = vmatpush2.bf16.msra.mxu0 0
  %101 = vmatprep.subr.bf16.mxu0 0
  %102 = vmatpush2.bf16.msra.mxu0 0
  %103 = vmatprep.subr.bf16.mxu0 0
  %104 = vmatpush2.bf16.msra.mxu0 0
  %105 = vmatprep.mubr.bf16.mxu0 0
  %106 = vmatmul.mubr.bf16.gmra.mxu0 %v71
  %v107 = vpop.f32.mrf.mxu0
  %v108 = vadd.f32 0.0, %v107
  %v109 = vpop.f32.mrf.mxu0
  %v110 = vpop.f32.mrf.mxu0
  %v111 = vpop.f32.mrf.mxu0
  %112 = vdwg.mxu0
  %v113 = vmul.f32 %v108, 0.35355338
  %v114 = vpack.c.bf16 %v113, %v113
  %vm115 = vcmask 257024
  %116 = vst.msk [vmem:[%s4] sm:$0xf] %vm115, %v114
  %v117 = vpack.c.bf16 %v108, %v108
  %v119 = vunpack.c.l.b16 %v117
  %v120 = vpack.c.b16 %v119, %v119
  %121 = vrot.lane.b32.xlu0 %v120, 96
  %v122 = vpop.permute.xlu0 %121
  %124 = vst.msk [vmem:[%s5] sm:$0xf] %vm115, %v122
  %125 = vrot.lane.b32.xlu0 %v120, 64
  %v126 = vpop.permute.xlu0 %125
  %128 = vst.msk [vmem:[%s6] sm:$0xf] %vm115, %v126
  // Predicated region
  $region18: #{group_token_transformer_encoder.6} parent=0 // pred_check
    _
  $region19: #{group_token_transformer_encoder.6} parent=0 // pred_check_branch
    %130 = sbr.rel (0) target = $region21
  $region20: #{group_token_transformer_encoder.6} parent=0 // pred_region
    _
  $region21: #{group_token_transformer_encoder.6} parent=0 // pred_fallthru
    _
  // Predicated region
  $region22: #{group_token_transformer_encoder.6} parent=0 // pred_check
    _
  $region23: #{group_token_transformer_encoder.6} parent=0 // pred_check_branch
    %132 = sbr.rel (0) target = $region25
  $region24: #{group_token_transformer_encoder.6} parent=0 // pred_region
    _
  $region25: #{group_token_transformer_encoder.6} parent=0 // pred_fallthru
    _
  // Predicated region
  $region26: #{group_token_transformer_encoder.6} parent=0 // pred_check
    _
  $region27: #{group_token_transformer_encoder.6} parent=0 // pred_check_branch
    %134 = sbr.rel (0) target = $region29
  $region28: #{group_token_transformer_encoder.6} parent=0 // pred_region
    _
  $region29: #{group_token_transformer_encoder.6} parent=0 // pred_fallthru
    _
  // Predicated region
  $region30: #{group_token_transformer_encoder.6} parent=0 // pred_check
    _
  $region31: #{group_token_transformer_encoder.6} parent=0 // pred_check_branch
    %136 = sbr.rel (0) target = $region33
  $region32: #{group_token_transformer_encoder.6} parent=0 // pred_region
    _
  $region33: #{group_token_transformer_encoder.6} parent=0 // pred_fallthru
    _
  // Predicated region
  $region34: #{group_token_transformer_encoder.6} parent=0 // pred_check
    _
  $region35: #{group_token_transformer_encoder.6} parent=0 // pred_check_branch
    %138 = sbr.rel (0) target = $region37
  $region36: #{group_token_transformer_encoder.6} parent=0 // pred_region
    _
  $region37: #{group_token_transformer_encoder.6} parent=0 // pred_fallthru
    _
  // Predicated region
  $region38: #{group_token_transformer_encoder.6} parent=0 // pred_check
    _
  $region39: #{group_token_transformer_encoder.6} parent=0 // pred_check_branch
    %140 = sbr.rel (0) target = $region41
  $region40: #{group_token_transformer_encoder.6} parent=0 // pred_region
    _
  $region41: #{group_token_transformer_encoder.6} parent=0 // pred_fallthru
    _

// kernel: group_token_transformer_encoder.8
$region0: #{group_token_transformer_encoder.8}
  #allocation0 [shape = 'u32[]', space=smem, size = 0x4, offset = 0x4, fixed_abs, tag = 'smem constant byte address 0x4 - core index']
  #allocation1 [shape = 'u32[144,128]{1,0:T(1,128)}', space=vmem, size = 0x12000, scoped, tag = 'internal scratch']
  #allocation2 [shape = 'bf16[8,32]{1,0:T(8,128)(2,1)}', space=vmem, size = 0x800, scoped, tag = 'scratch operand']
  #allocation3 [shape = 'f32[8,32]{1,0:T(8,128)}', space=vmem, size = 0x1000, scoped, tag = 'scratch operand']
  %s0 = inlined_call_operand.vmem [shape: f32[8,32], index: 0, kind: input, shape index: {}, may-alias: {0,9}]
  %s1 = inlined_call_operand.vmem [shape: f32[1,32], index: 1, kind: input, shape index: {}]
  %s2 = inlined_call_operand.vmem [shape: f32[1,32], index: 2, kind: input, shape index: {}]
  %s3 = inlined_call_operand.vmem [shape: bf16[32,128], index: 3, kind: input, shape index: {}]
  %s4 = inlined_call_operand.vmem [shape: f32[1,128], index: 4, kind: input, shape index: {}]
  %s5 = inlined_call_operand.vmem [shape: bf16[128,32], index: 5, kind: input, shape index: {}]
  %s6 = inlined_call_operand.vmem [shape: f32[1,32], index: 6, kind: input, shape index: {}]
  %s7 = inlined_call_operand.vmem [shape: f32[1,32], index: 7, kind: input, shape index: {}]
  %s8 = inlined_call_operand.vmem [shape: f32[1,32], index: 8, kind: input, shape index: {}]
  %s9 = inlined_call_operand.vmem [shape: f32[8,32], index: 9, kind: output, shape index: {}, may-alias: {0,9}]
  %s10 = sld [smem:[#allocation0]]
  $region54: #{group_token_transformer_encoder.8} parent=0
    _
  %s12 = ssub.s32 1, %s10
  %s13 = scalar_select 0, %s12, %s10
  // Predicated region
  $region2: #{group_token_transformer_encoder.8} parent=0 // pred_check
    _
  $region3: #{group_token_transformer_encoder.8} parent=0 // pred_check_branch
    %15 = sbr.rel (0) target = $region5
  $region4: #{group_token_transformer_encoder.8} parent=0 // pred_region
    _
  $region5: #{group_token_transformer_encoder.8} parent=0 // pred_fallthru
    _
  // Predicated region
  $region6: #{group_token_transformer_encoder.8} parent=0 // pred_check
    _
  $region7: #{group_token_transformer_encoder.8} parent=0 // pred_check_branch
    %17 = sbr.rel (0) target = $region9
  $region8: #{group_token_transformer_encoder.8} parent=0 // pred_region
    _
  $region9: #{group_token_transformer_encoder.8} parent=0 // pred_fallthru
    _
  // Predicated region
  $region10: #{group_token_transformer_encoder.8} parent=0 // pred_check
    _
  $region11: #{group_token_transformer_encoder.8} parent=0 // pred_check_branch
    %19 = sbr.rel (0) target = $region13
  $region12: #{group_token_transformer_encoder.8} parent=0 // pred_region
    _
  $region13: #{group_token_transformer_encoder.8} parent=0 // pred_fallthru
    _
  // Predicated region
  $region14: #{group_token_transformer_encoder.8} parent=0 // pred_check
    _
  $region15: #{group_token_transformer_encoder.8} parent=0 // pred_check_branch
    %21 = sbr.rel (0) target = $region17
  $region16: #{group_token_transformer_encoder.8} parent=0 // pred_region
    _
  $region17: #{group_token_transformer_encoder.8} parent=0 // pred_fallthru
    _
  // Predicated region
  $region18: #{group_token_transformer_encoder.8} parent=0 // pred_check
    _
  $region19: #{group_token_transformer_encoder.8} parent=0 // pred_check_branch
    %23 = sbr.rel (0) target = $region21
  $region20: #{group_token_transformer_encoder.8} parent=0 // pred_region
    _
  $region21: #{group_token_transformer_encoder.8} parent=0 // pred_fallthru
    _
  // Predicated region
  $region22: #{group_token_transformer_encoder.8} parent=0 // pred_check
    _
  $region23: #{group_token_transformer_encoder.8} parent=0 // pred_check_branch
    %25 = sbr.rel (0) target = $region25
  $region24: #{group_token_transformer_encoder.8} parent=0 // pred_region
    _
  $region25: #{group_token_transformer_encoder.8} parent=0 // pred_fallthru
    _
  // Predicated region
  $region26: #{group_token_transformer_encoder.8} parent=0 // pred_check
    _
  $region27: #{group_token_transformer_encoder.8} parent=0 // pred_check_branch
    %27 = sbr.rel (0) target = $region29
  $region28: #{group_token_transformer_encoder.8} parent=0 // pred_region
    _
  $region29: #{group_token_transformer_encoder.8} parent=0 // pred_fallthru
    _
  // Predicated region
  $region30: #{group_token_transformer_encoder.8} parent=0 // pred_check
    _
  $region31: #{group_token_transformer_encoder.8} parent=0 // pred_check_branch
    %29 = sbr.rel (0) target = $region33
  $region32: #{group_token_transformer_encoder.8} parent=0 // pred_region
    _
  $region33: #{group_token_transformer_encoder.8} parent=0 // pred_fallthru
    _
  // Predicated region
  $region34: #{group_token_transformer_encoder.8} parent=0 // pred_check
    _
  $region35: #{group_token_transformer_encoder.8} parent=0 // pred_check_branch
    %31 = sbr.rel (0) target = $region37
  $region36: #{group_token_transformer_encoder.8} parent=0 // pred_region
    _
  $region37: #{group_token_transformer_encoder.8} parent=0 // pred_fallthru
    _
  %p33 = scmp.eq.s32.totalorder 0, 0
  // Predicated region
  $region38: #{group_token_transformer_encoder.8} parent=0 // pred_check
    %p34 = pneg %p33
  $region39: #{group_token_transformer_encoder.8} parent=0 // pred_check_branch
    %36 = sbr.rel (%p34) target = $region41
  $region40: #{group_token_transformer_encoder.8} parent=0 // pred_region
    %v37 = vld [vmem:[%s0] sm:$0xff]
    %v38 = vld [vmem:[%s1] sm:$0x1]
    %v39 = vld [vmem:[%s2] sm:$0x1]
    %vm40 = vcmask 261120
    %v41 = vsel %vm40, %v37, 0.0
    %42 = vadd.xlane.f32.xlu0 %v41
    %v43 = vpop.xlane.xlu0 %42
    %v44 = vrcp.pop 32.0
    %v45 = vmul.f32 %v43, %v44
    %v46 = vsub.f32 %v37, %v45
    %v47 = vmul.f32 %v46, %v46
    %v48 = vsel %vm40, %v47, 0.0
    %49 = vadd.xlane.f32.xlu0 %v48
    %v50 = vpop.xlane.xlu0 %49
    %v51 = vmul.f32 %v50, %v44
    %v52 = vadd.f32 %v51, 1e-05
    %v53 = vrsqrt.pop %v52
    %v54 = vmul.f32 %v46, %v53
    %v56 = vlaneseq
    %v57 = vshrl.u32 %v56, 7
    %v58 = vsub.s32 0, %v57
    %v59 = vrot.slane %v38, %v58
    %v61 = vmul.f32 %v54, %v59
    %v63 = vlaneseq
    %v64 = vshrl.u32 %v63, 7
    %v65 = vsub.s32 0, %v64
    %v66 = vrot.slane %v39, %v65
    %v68 = vadd.f32 %v61, %v66
    %v69 = vpack.c.bf16 %v68, %v68
    %vm70 = vcmask 257024
    %71 = vst.msk [vmem:[#allocation2] sm:$0xf] %vm70, %v69
    %v72 = vld [vmem:[%s6] sm:$0x1]
    %v74 = vlaneseq
    %v75 = vshrl.u32 %v74, 7
    %v76 = vsub.s32 0, %v75
    %v77 = vrot.slane %v72, %v76
    %v79 = vadd.f32 %v37, %v77
    %80 = vst.msk [vmem:[#allocation3] sm:$0xff] %vm40, %v79
  $region41: #{group_token_transformer_encoder.8} parent=0 // pred_fallthru
    _
  %v81 = vld [vmem:[#allocation2] sm:$0xf]
  %v82 = vld [vmem:[%s3] sm:$0xf]
  %v83 = vld [vmem:[%s3 + $0x4] sm:$0xf]
  %v84 = vld [vmem:[%s3 + $0x8] sm:$0xf]
  %v85 = vld [vmem:[%s3 + $0xc] sm:$0xf]
  %v86 = vld [vmem:[%s4] sm:$0x1]
  %v88 = vlaneseq
  %v89 = vshrl.u32 %v88, 7
  %v90 = vsub.s32 0, %v89
  %v91 = vrot.slane %v86, %v90
  %v97 = vunpack.c.l.b16 %v82
  %v98 = vunpack.c.l.b16 %v83
  %v99 = vunpack.c.l.b16 %v84
  %v100 = vunpack.c.l.b16 %v85
  %v101 = vpack.c.b16 %v98, %v97
  %v102 = vpack.c.b16 %v100, %v99
  %vm105 = vcmask 261120
  %v107 = vsel %vm105, %v81, 0
  %109 = vmatprep.subr.bf16.mxu0 0
  %110 = vmatpush1.bf16.msra.mxu0 0
  %111 = vmatprep.subr.bf16.mxu0 0
  %112 = vmatpush1.bf16.msra.mxu0 0
  %113 = vmatprep.subr.bf16.mxu0 0
  %114 = vmatpush1.bf16.msra.mxu0 0
  %115 = vmatprep.subr.bf16.mxu0 0
  %116 = vmatpush1.bf16.msra.mxu0 0
  %117 = vmatprep.subr.bf16.mxu0 0
  %118 = vmatpush1.bf16.msra.mxu0 0
  %119 = vmatprep.subr.bf16.mxu0 0
  %120 = vmatpush1.bf16.msra.mxu0 0
  %121 = vmatprep.subr.bf16.mxu0 0
  %122 = vmatpush1.bf16.msra.mxu0 %v102
  %123 = vmatprep.subr.bf16.mxu0 0
  %124 = vmatpush1.bf16.msra.mxu0 %v101
  %125 = vmatprep.subr.bf16.mxu0 0
  %126 = vmatpush2.bf16.msra.mxu0 0
  %127 = vmatprep.subr.bf16.mxu0 0
  %128 = vmatpush2.bf16.msra.mxu0 0
  %129 = vmatprep.subr.bf16.mxu0 0
  %130 = vmatpush2.bf16.msra.mxu0 0
  %131 = vmatprep.subr.bf16.mxu0 0
  %132 = vmatpush2.bf16.msra.mxu0 0
  %133 = vmatprep.subr.bf16.mxu0 0
  %134 = vmatpush2.bf16.msra.mxu0 0
  %135 = vmatprep.subr.bf16.mxu0 0
  %136 = vmatpush2.bf16.msra.mxu0 0
  %137 = vmatprep.subr.bf16.mxu0 0
  %138 = vmatpush2.bf16.msra.mxu0 0
  %139 = vmatprep.subr.bf16.mxu0 0
  %140 = vmatpush2.bf16.msra.mxu0 0
  %141 = vmatprep.mubr.bf16.mxu0 0
  %142 = vmatmul.mubr.bf16.gmra.mxu0 %v107
  %v143 = vpop.f32.mrf.mxu0
  %v144 = vadd.f32 %v91, %v143
  %v145 = vpop.f32.mrf.mxu0
  %v146 = vpop.f32.mrf.mxu0
  %v147 = vpop.f32.mrf.mxu0
  %148 = vdwg.mxu0
  %v149 = vmul.f32 %v144, 0.5
  %v150 = vmul.f32 %v144, 0.70710677
  %v151 = verf.f32.pop %v150
  %v152 = vadd.f32 %v151, 1.0
  %v153 = vmul.f32 %v149, %v152
  %v154 = vld [vmem:[#allocation3] sm:$0xff]
  %v155 = vpack.c.bf16 %v153, %v153
  %v156 = vld [vmem:[%s5] sm:$0xf]
  %v157 = vld [vmem:[%s5 + $0x4] sm:$0xf]
  %v158 = vld [vmem:[%s5 + $0x8] sm:$0xf]
  %v159 = vld [vmem:[%s5 + $0xc] sm:$0xf]
  %v160 = vld [vmem:[%s5 + $0x10] sm:$0xf]
  %v161 = vld [vmem:[%s5 + $0x14] sm:$0xf]
  %v162 = vld [vmem:[%s5 + $0x18] sm:$0xf]
  %v163 = vld [vmem:[%s5 + $0x1c] sm:$0xf]
  %v164 = vld [vmem:[%s5 + $0x20] sm:$0xf]
  %v165 = vld [vmem:[%s5 + $0x24] sm:$0xf]
  %v166 = vld [vmem:[%s5 + $0x28] sm:$0xf]
  %v167 = vld [vmem:[%s5 + $0x2c] sm:$0xf]
  %v168 = vld [vmem:[%s5 + $0x30] sm:$0xf]
  %v169 = vld [vmem:[%s5 + $0x34] sm:$0xf]
  %v170 = vld [vmem:[%s5 + $0x38] sm:$0xf]
  %v171 = vld [vmem:[%s5 + $0x3c] sm:$0xf]
  %v188 = vunpack.c.l.b16 %v156
  %v189 = vunpack.c.l.b16 %v157
  %v190 = vunpack.c.l.b16 %v158
  %v191 = vunpack.c.l.b16 %v159
  %v192 = vunpack.c.l.b16 %v160
  %v193 = vunpack.c.l.b16 %v161
  %v194 = vunpack.c.l.b16 %v162
  %v195 = vunpack.c.l.b16 %v163
  %v196 = vunpack.c.l.b16 %v164
  %v197 = vunpack.c.l.b16 %v165
  %v198 = vunpack.c.l.b16 %v166
  %v199 = vunpack.c.l.b16 %v167
  %v200 = vunpack.c.l.b16 %v168
  %v201 = vunpack.c.l.b16 %v169
  %v202 = vunpack.c.l.b16 %v170
  %v203 = vunpack.c.l.b16 %v171
  %v204 = vpack.c.b16 %v189, %v188
  %v205 = vpack.c.b16 %v191, %v190
  %v206 = vpack.c.b16 %v193, %v192
  %v207 = vpack.c.b16 %v195, %v194
  %v208 = vpack.c.b16 %v197, %v196
  %v209 = vpack.c.b16 %v199, %v198
  %v210 = vpack.c.b16 %v201, %v200
  %v211 = vpack.c.b16 %v203, %v202
  %220 = vmatprep.subr.bf16.mxu0 0
  %221 = vmatpush1.bf16.msra.mxu0 %v211
  %222 = vmatprep.subr.bf16.mxu0 0
  %223 = vmatpush1.bf16.msra.mxu0 %v210
  %224 = vmatprep.subr.bf16.mxu0 0
  %225 = vmatpush1.bf16.msra.mxu0 %v209
  %226 = vmatprep.subr.bf16.mxu0 0
  %227 = vmatpush1.bf16.msra.mxu0 %v208
  %228 = vmatprep.subr.bf16.mxu0 0
  %229 = vmatpush1.bf16.msra.mxu0 %v207
  %230 = vmatprep.subr.bf16.mxu0 0
  %231 = vmatpush1.bf16.msra.mxu0 %v206
  %232 = vmatprep.subr.bf16.mxu0 0
  %233 = vmatpush1.bf16.msra.mxu0 %v205
  %234 = vmatprep.subr.bf16.mxu0 0
  %235 = vmatpush1.bf16.msra.mxu0 %v204
  %236 = vmatprep.subr.bf16.mxu0 0
  %237 = vmatpush2.bf16.msra.mxu0 0
  %238 = vmatprep.subr.bf16.mxu0 0
  %239 = vmatpush2.bf16.msra.mxu0 0
  %240 = vmatprep.subr.bf16.mxu0 0
  %241 = vmatpush2.bf16.msra.mxu0 0
  %242 = vmatprep.subr.bf16.mxu0 0
  %243 = vmatpush2.bf16.msra.mxu0 0
  %244 = vmatprep.subr.bf16.mxu0 0
  %245 = vmatpush2.bf16.msra.mxu0 0
  %246 = vmatprep.subr.bf16.mxu0 0
  %247 = vmatpush2.bf16.msra.mxu0 0
  %248 = vmatprep.subr.bf16.mxu0 0
  %249 = vmatpush2.bf16.msra.mxu0 0
  %250 = vmatprep.subr.bf16.mxu0 0
  %251 = vmatpush2.bf16.msra.mxu0 0
  %252 = vmatprep.mubr.bf16.mxu0 0
  %253 = vmatmul.mubr.bf16.gmra.mxu0 %v155
  %v254 = vpop.f32.mrf.mxu0
  %v255 = vadd.f32 0.0, %v254
  %v256 = vpop.f32.mrf.mxu0
  %v257 = vpop.f32.mrf.mxu0
  %v258 = vpop.f32.mrf.mxu0
  %259 = vdwg.mxu0
  %v260 = vadd.f32 %v154, %v255
  %261 = vst.msk [vmem:[#allocation3] sm:$0xff] %vm105, %v260
  // Predicated region
  $region42: #{group_token_transformer_encoder.8} parent=0 // pred_check
    %p262 = pneg %p33
  $region43: #{group_token_transformer_encoder.8} parent=0 // pred_check_branch
    %264 = sbr.rel (%p262) target = $region45
  $region44: #{group_token_transformer_encoder.8} parent=0 // pred_region
    %v265 = vld [vmem:[#allocation3] sm:$0xff]
    %266 = vst.msk [vmem:[%s9] sm:$0xff] %vm105, %v265
  $region45: #{group_token_transformer_encoder.8} parent=0 // pred_fallthru
    _
  // Predicated region
  $region46: #{group_token_transformer_encoder.8} parent=0 // pred_check
    _
  $region47: #{group_token_transformer_encoder.8} parent=0 // pred_check_branch
    %268 = sbr.rel (0) target = $region49
  $region48: #{group_token_transformer_encoder.8} parent=0 // pred_region
    _
  $region49: #{group_token_transformer_encoder.8} parent=0 // pred_fallthru
    _
  // Predicated region
  $region50: #{group_token_transformer_encoder.8} parent=0 // pred_check
    _
  $region51: #{group_token_transformer_encoder.8} parent=0 // pred_check_branch
    %270 = sbr.rel (0) target = $region53
  $region52: #{group_token_transformer_encoder.8} parent=0 // pred_region
    _
  $region53: #{group_token_transformer_encoder.8} parent=0 // pred_fallthru
    _

// kernel: group_token_transformer_encoder.7
$region0: #{group_token_transformer_encoder.7}
  #allocation0 [shape = 'u32[]', space=smem, size = 0x4, offset = 0x4, fixed_abs, tag = 'smem constant byte address 0x4 - core index']
  #allocation1 [shape = 'u32[144,128]{1,0:T(1,128)}', space=vmem, size = 0x12000, scoped, tag = 'internal scratch']
  %s0 = inlined_call_operand.vmem [shape: f32[8,32], index: 0, kind: input, shape index: {}, may-alias: {0,6}]
  %s1 = inlined_call_operand.vmem [shape: bf16[8,32], index: 1, kind: input, shape index: {}]
  %s2 = inlined_call_operand.vmem [shape: bf16[8,32], index: 2, kind: input, shape index: {}]
  %s3 = inlined_call_operand.vmem [shape: bf16[8,32], index: 3, kind: input, shape index: {}]
  %s4 = inlined_call_operand.vmem [shape: bf16[32,32], index: 4, kind: input, shape index: {}]
  %s5 = inlined_call_operand.vmem [shape: f32[1,32], index: 5, kind: input, shape index: {}]
  %s6 = inlined_call_operand.vmem [shape: f32[8,32], index: 6, kind: output, shape index: {}, may-alias: {0,6}]
  %s7 = sld [smem:[#allocation0]]
  $region34: #{group_token_transformer_encoder.7} parent=0
    _
  %s9 = ssub.s32 1, %s7
  %s10 = scalar_select 0, %s9, %s7
  // Predicated region
  $region2: #{group_token_transformer_encoder.7} parent=0 // pred_check
    _
  $region3: #{group_token_transformer_encoder.7} parent=0 // pred_check_branch
    %12 = sbr.rel (0) target = $region5
  $region4: #{group_token_transformer_encoder.7} parent=0 // pred_region
    _
  $region5: #{group_token_transformer_encoder.7} parent=0 // pred_fallthru
    _
  // Predicated region
  $region6: #{group_token_transformer_encoder.7} parent=0 // pred_check
    _
  $region7: #{group_token_transformer_encoder.7} parent=0 // pred_check_branch
    %14 = sbr.rel (0) target = $region9
  $region8: #{group_token_transformer_encoder.7} parent=0 // pred_region
    _
  $region9: #{group_token_transformer_encoder.7} parent=0 // pred_fallthru
    _
  // Predicated region
  $region10: #{group_token_transformer_encoder.7} parent=0 // pred_check
    _
  $region11: #{group_token_transformer_encoder.7} parent=0 // pred_check_branch
    %16 = sbr.rel (0) target = $region13
  $region12: #{group_token_transformer_encoder.7} parent=0 // pred_region
    _
  $region13: #{group_token_transformer_encoder.7} parent=0 // pred_fallthru
    _
  // Predicated region
  $region14: #{group_token_transformer_encoder.7} parent=0 // pred_check
    _
  $region15: #{group_token_transformer_encoder.7} parent=0 // pred_check_branch
    %18 = sbr.rel (0) target = $region17
  $region16: #{group_token_transformer_encoder.7} parent=0 // pred_region
    _
  $region17: #{group_token_transformer_encoder.7} parent=0 // pred_fallthru
    _
  // Predicated region
  $region18: #{group_token_transformer_encoder.7} parent=0 // pred_check
    _
  $region19: #{group_token_transformer_encoder.7} parent=0 // pred_check_branch
    %20 = sbr.rel (0) target = $region21
  $region20: #{group_token_transformer_encoder.7} parent=0 // pred_region
    _
  $region21: #{group_token_transformer_encoder.7} parent=0 // pred_fallthru
    _
  // Predicated region
  $region22: #{group_token_transformer_encoder.7} parent=0 // pred_check
    _
  $region23: #{group_token_transformer_encoder.7} parent=0 // pred_check_branch
    %22 = sbr.rel (0) target = $region25
  $region24: #{group_token_transformer_encoder.7} parent=0 // pred_region
    _
  $region25: #{group_token_transformer_encoder.7} parent=0 // pred_fallthru
    _
  %v24 = vld [vmem:[%s0] sm:$0xff]
  %v25 = vld [vmem:[%s1] sm:$0xf]
  %v26 = vunpack.c.l.bf16 %v25
  %v27 = vld [vmem:[%s2] sm:$0xf]
  %v28 = vunpack.c.l.bf16 %v27
  %v29 = vld [vmem:[%s3] sm:$0xf]
  %v30 = vunpack.c.l.bf16 %v29
  %32 = vrot.lane.b32.xlu0 %v26, 120
  %v33 = vpop.permute.xlu0 %32
  %35 = vrot.lane.b32.xlu0 %v26, 112
  %v36 = vpop.permute.xlu0 %35
  %38 = vrot.lane.b32.xlu0 %v26, 104
  %v39 = vpop.permute.xlu0 %38
  %v41 = vcombine.low %v26, %v36
  %v42 = vcombine.high %v26, %v36
  %v44 = vunpack.c.l.s4 1983009808
  %v45 = vunpack.c.0.s8 %v44
  %v46 = vlaneseq
  %v47 = vshrl.u32 %v46, 7
  %v48 = vsub.s32 %v45, %v47
  %v49 = vrot.slane %v41, %v48
  %v51 = vunpack.c.l.s4 1983009808
  %v52 = vunpack.c.0.s8 %v51
  %v53 = vlaneseq
  %v54 = vshrl.u32 %v53, 7
  %v55 = vsub.s32 %v52, %v54
  %v56 = vrot.slane %v42, %v55
  %v57 = vcombine.low %v33, %v39
  %v58 = vcombine.high %v33, %v39
  %v60 = vunpack.c.l.s4 1983009808
  %v61 = vunpack.c.0.s8 %v60
  %v62 = vlaneseq
  %v63 = vshrl.u32 %v62, 7
  %v64 = vsub.s32 %v61, %v63
  %v65 = vrot.slane %v57, %v64
  %v67 = vunpack.c.l.s4 1983009808
  %v68 = vunpack.c.0.s8 %v67
  %v69 = vlaneseq
  %v70 = vshrl.u32 %v69, 7
  %v71 = vsub.s32 %v68, %v70
  %v72 = vrot.slane %v58, %v71
  %v73 = vcombine.low %v49, %v65
  %v74 = vcombine.high %v49, %v65
  %v76 = vunpack.c.l.s4 1934713408
  %v77 = vunpack.c.0.s8 %v76
  %v78 = vlaneseq
  %v79 = vshrl.u32 %v78, 7
  %v80 = vsub.s32 %v77, %v79
  %v81 = vrot.slane %v73, %v80
  %v83 = vunpack.c.l.s4 1934713408
  %v84 = vunpack.c.0.s8 %v83
  %v85 = vlaneseq
  %v86 = vshrl.u32 %v85, 7
  %v87 = vsub.s32 %v84, %v86
  %v88 = vrot.slane %v74, %v87
  %v89 = vcombine.low %v56, %v72
  %v90 = vcombine.high %v56, %v72
  %v92 = vunpack.c.l.s4 1934713408
  %v93 = vunpack.c.0.s8 %v92
  %v94 = vlaneseq
  %v95 = vshrl.u32 %v94, 7
  %v96 = vsub.s32 %v93, %v95
  %v97 = vrot.slane %v89, %v96
  %v99 = vunpack.c.l.s4 1934713408
  %v100 = vunpack.c.0.s8 %v99
  %v101 = vlaneseq
  %v102 = vshrl.u32 %v101, 7
  %v103 = vsub.s32 %v100, %v102
  %v104 = vrot.slane %v90, %v103
  %v105 = vcombine.high %v81, 0.0
  %v106 = vcombine.high %v88, 0.0
  %v107 = vcombine.high %v97, 0.0
  %v108 = vcombine.high %v104, 0.0
  %v109 = vcombine.low %v81, %v88
  %v111 = vunpack.c.l.s4 1983009808
  %v112 = vunpack.c.0.s8 %v111
  %v113 = vlaneseq
  %v114 = vshrl.u32 %v113, 7
  %v115 = vsub.s32 %v112, %v114
  %v116 = vrot.slane %v109, %v115
  %v117 = vcombine.low %v105, %v106
  %v119 = vunpack.c.l.s4 1983009808
  %v120 = vunpack.c.0.s8 %v119
  %v121 = vlaneseq
  %v122 = vshrl.u32 %v121, 7
  %v123 = vsub.s32 %v120, %v122
  %v124 = vrot.slane %v117, %v123
  %v125 = vcombine.low %v97, %v104
  %v127 = vunpack.c.l.s4 1983009808
  %v128 = vunpack.c.0.s8 %v127
  %v129 = vlaneseq
  %v130 = vshrl.u32 %v129, 7
  %v131 = vsub.s32 %v128, %v130
  %v132 = vrot.slane %v125, %v131
  %v133 = vcombine.low %v107, %v108
  %v135 = vunpack.c.l.s4 1983009808
  %v136 = vunpack.c.0.s8 %v135
  %v137 = vlaneseq
  %v138 = vshrl.u32 %v137, 7
  %v139 = vsub.s32 %v136, %v138
  %v140 = vrot.slane %v133, %v139
  %v141 = vcombine.low %v116, %v124
  %v142 = vcombine.high %v116, %v124
  %v144 = vunpack.c.l.s4 1934713408
  %v145 = vunpack.c.0.s8 %v144
  %v146 = vlaneseq
  %v147 = vshrl.u32 %v146, 7
  %v148 = vsub.s32 %v145, %v147
  %v149 = vrot.slane %v141, %v148
  %v151 = vunpack.c.l.s4 1934713408
  %v152 = vunpack.c.0.s8 %v151
  %v153 = vlaneseq
  %v154 = vshrl.u32 %v153, 7
  %v155 = vsub.s32 %v152, %v154
  %v156 = vrot.slane %v142, %v155
  %v157 = vcombine.low %v132, %v140
  %v158 = vcombine.high %v132, %v140
  %v160 = vunpack.c.l.s4 1934713408
  %v161 = vunpack.c.0.s8 %v160
  %v162 = vlaneseq
  %v163 = vshrl.u32 %v162, 7
  %v164 = vsub.s32 %v161, %v163
  %v165 = vrot.slane %v157, %v164
  %v167 = vunpack.c.l.s4 1934713408
  %v168 = vunpack.c.0.s8 %v167
  %v169 = vlaneseq
  %v170 = vshrl.u32 %v169, 7
  %v171 = vsub.s32 %v168, %v170
  %v172 = vrot.slane %v158, %v171
  %v173 = vcombine.low %v149, %v165
  %v174 = vcombine.high %v149, %v165
  %v175 = vcombine.low %v156, %v172
  %v176 = vcombine.high %v156, %v172
  %v177 = vpack.c.bf16 %v173, %v173
  %v178 = vpack.c.bf16 %v174, %v174
  %v179 = vpack.c.bf16 %v175, %v175
  %v180 = vpack.c.bf16 %v176, %v176
  %182 = vrot.lane.b32.xlu0 %v28, 120
  %v183 = vpop.permute.xlu0 %182
  %185 = vrot.lane.b32.xlu0 %v28, 112
  %v186 = vpop.permute.xlu0 %185
  %188 = vrot.lane.b32.xlu0 %v28, 104
  %v189 = vpop.permute.xlu0 %188
  %v191 = vcombine.low %v28, %v186
  %v192 = vcombine.high %v28, %v186
  %v194 = vunpack.c.l.s4 1983009808
  %v195 = vunpack.c.0.s8 %v194
  %v196 = vlaneseq
  %v197 = vshrl.u32 %v196, 7
  %v198 = vsub.s32 %v195, %v197
  %v199 = vrot.slane %v191, %v198
  %v201 = vunpack.c.l.s4 1983009808
  %v202 = vunpack.c.0.s8 %v201
  %v203 = vlaneseq
  %v204 = vshrl.u32 %v203, 7
  %v205 = vsub.s32 %v202, %v204
  %v206 = vrot.slane %v192, %v205
  %v207 = vcombine.low %v183, %v189
  %v208 = vcombine.high %v183, %v189
  %v210 = vunpack.c.l.s4 1983009808
  %v211 = vunpack.c.0.s8 %v210
  %v212 = vlaneseq
  %v213 = vshrl.u32 %v212, 7
  %v214 = vsub.s32 %v211, %v213
  %v215 = vrot.slane %v207, %v214
  %v217 = vunpack.c.l.s4 1983009808
  %v218 = vunpack.c.0.s8 %v217
  %v219 = vlaneseq
  %v220 = vshrl.u32 %v219, 7
  %v221 = vsub.s32 %v218, %v220
  %v222 = vrot.slane %v208, %v221
  %v223 = vcombine.low %v199, %v215
  %v224 = vcombine.high %v199, %v215
  %v226 = vunpack.c.l.s4 1934713408
  %v227 = vunpack.c.0.s8 %v226
  %v228 = vlaneseq
  %v229 = vshrl.u32 %v228, 7
  %v230 = vsub.s32 %v227, %v229
  %v231 = vrot.slane %v223, %v230
  %v233 = vunpack.c.l.s4 1934713408
  %v234 = vunpack.c.0.s8 %v233
  %v235 = vlaneseq
  %v236 = vshrl.u32 %v235, 7
  %v237 = vsub.s32 %v234, %v236
  %v238 = vrot.slane %v224, %v237
  %v239 = vcombine.low %v206, %v222
  %v240 = vcombine.high %v206, %v222
  %v242 = vunpack.c.l.s4 1934713408
  %v243 = vunpack.c.0.s8 %v242
  %v244 = vlaneseq
  %v245 = vshrl.u32 %v244, 7
  %v246 = vsub.s32 %v243, %v245
  %v247 = vrot.slane %v239, %v246
  %v249 = vunpack.c.l.s4 1934713408
  %v250 = vunpack.c.0.s8 %v249
  %v251 = vlaneseq
  %v252 = vshrl.u32 %v251, 7
  %v253 = vsub.s32 %v250, %v252
  %v254 = vrot.slane %v240, %v253
  %v255 = vcombine.high %v231, 0.0
  %v256 = vcombine.high %v238, 0.0
  %v257 = vcombine.high %v247, 0.0
  %v258 = vcombine.high %v254, 0.0
  %v259 = vcombine.low %v231, %v238
  %v261 = vunpack.c.l.s4 1983009808
  %v262 = vunpack.c.0.s8 %v261
  %v263 = vlaneseq
  %v264 = vshrl.u32 %v263, 7
  %v265 = vsub.s32 %v262, %v264
  %v266 = vrot.slane %v259, %v265
  %v267 = vcombine.low %v255, %v256
  %v269 = vunpack.c.l.s4 1983009808
  %v270 = vunpack.c.0.s8 %v269
  %v271 = vlaneseq
  %v272 = vshrl.u32 %v271, 7
  %v273 = vsub.s32 %v270, %v272
  %v274 = vrot.slane %v267, %v273
  %v275 = vcombine.low %v247, %v254
  %v277 = vunpack.c.l.s4 1983009808
  %v278 = vunpack.c.0.s8 %v277
  %v279 = vlaneseq
  %v280 = vshrl.u32 %v279, 7
  %v281 = vsub.s32 %v278, %v280
  %v282 = vrot.slane %v275, %v281
  %v283 = vcombine.low %v257, %v258
  %v285 = vunpack.c.l.s4 1983009808
  %v286 = vunpack.c.0.s8 %v285
  %v287 = vlaneseq
  %v288 = vshrl.u32 %v287, 7
  %v289 = vsub.s32 %v286, %v288
  %v290 = vrot.slane %v283, %v289
  %v291 = vcombine.low %v266, %v274
  %v292 = vcombine.high %v266, %v274
  %v294 = vunpack.c.l.s4 1934713408
  %v295 = vunpack.c.0.s8 %v294
  %v296 = vlaneseq
  %v297 = vshrl.u32 %v296, 7
  %v298 = vsub.s32 %v295, %v297
  %v299 = vrot.slane %v291, %v298
  %v301 = vunpack.c.l.s4 1934713408
  %v302 = vunpack.c.0.s8 %v301
  %v303 = vlaneseq
  %v304 = vshrl.u32 %v303, 7
  %v305 = vsub.s32 %v302, %v304
  %v306 = vrot.slane %v292, %v305
  %v307 = vcombine.low %v282, %v290
  %v308 = vcombine.high %v282, %v290
  %v310 = vunpack.c.l.s4 1934713408
  %v311 = vunpack.c.0.s8 %v310
  %v312 = vlaneseq
  %v313 = vshrl.u32 %v312, 7
  %v314 = vsub.s32 %v311, %v313
  %v315 = vrot.slane %v307, %v314
  %v317 = vunpack.c.l.s4 1934713408
  %v318 = vunpack.c.0.s8 %v317
  %v319 = vlaneseq
  %v320 = vshrl.u32 %v319, 7
  %v321 = vsub.s32 %v318, %v320
  %v322 = vrot.slane %v308, %v321
  %v323 = vcombine.low %v299, %v315
  %v324 = vcombine.high %v299, %v315
  %v325 = vcombine.low %v306, %v322
  %v326 = vcombine.high %v306, %v322
  %v327 = vpack.c.bf16 %v323, %v323
  %v328 = vpack.c.bf16 %v324, %v324
  %v329 = vpack.c.bf16 %v325, %v325
  %v330 = vpack.c.bf16 %v326, %v326
  %332 = vrot.lane.b32.xlu0 %v30, 120
  %v333 = vpop.permute.xlu0 %332
  %335 = vrot.lane.b32.xlu0 %v30, 112
  %v336 = vpop.permute.xlu0 %335
  %338 = vrot.lane.b32.xlu0 %v30, 104
  %v339 = vpop.permute.xlu0 %338
  %v341 = vcombine.low %v30, %v336
  %v342 = vcombine.high %v30, %v336
  %v344 = vunpack.c.l.s4 1983009808
  %v345 = vunpack.c.0.s8 %v344
  %v346 = vlaneseq
  %v347 = vshrl.u32 %v346, 7
  %v348 = vsub.s32 %v345, %v347
  %v349 = vrot.slane %v341, %v348
  %v351 = vunpack.c.l.s4 1983009808
  %v352 = vunpack.c.0.s8 %v351
  %v353 = vlaneseq
  %v354 = vshrl.u32 %v353, 7
  %v355 = vsub.s32 %v352, %v354
  %v356 = vrot.slane %v342, %v355
  %v357 = vcombine.low %v333, %v339
  %v358 = vcombine.high %v333, %v339
  %v360 = vunpack.c.l.s4 1983009808
  %v361 = vunpack.c.0.s8 %v360
  %v362 = vlaneseq
  %v363 = vshrl.u32 %v362, 7
  %v364 = vsub.s32 %v361, %v363
  %v365 = vrot.slane %v357, %v364
  %v367 = vunpack.c.l.s4 1983009808
  %v368 = vunpack.c.0.s8 %v367
  %v369 = vlaneseq
  %v370 = vshrl.u32 %v369, 7
  %v371 = vsub.s32 %v368, %v370
  %v372 = vrot.slane %v358, %v371
  %v373 = vcombine.low %v349, %v365
  %v374 = vcombine.high %v349, %v365
  %v376 = vunpack.c.l.s4 1934713408
  %v377 = vunpack.c.0.s8 %v376
  %v378 = vlaneseq
  %v379 = vshrl.u32 %v378, 7
  %v380 = vsub.s32 %v377, %v379
  %v381 = vrot.slane %v373, %v380
  %v383 = vunpack.c.l.s4 1934713408
  %v384 = vunpack.c.0.s8 %v383
  %v385 = vlaneseq
  %v386 = vshrl.u32 %v385, 7
  %v387 = vsub.s32 %v384, %v386
  %v388 = vrot.slane %v374, %v387
  %v389 = vcombine.low %v356, %v372
  %v390 = vcombine.high %v356, %v372
  %v392 = vunpack.c.l.s4 1934713408
  %v393 = vunpack.c.0.s8 %v392
  %v394 = vlaneseq
  %v395 = vshrl.u32 %v394, 7
  %v396 = vsub.s32 %v393, %v395
  %v397 = vrot.slane %v389, %v396
  %v399 = vunpack.c.l.s4 1934713408
  %v400 = vunpack.c.0.s8 %v399
  %v401 = vlaneseq
  %v402 = vshrl.u32 %v401, 7
  %v403 = vsub.s32 %v400, %v402
  %v404 = vrot.slane %v390, %v403
  %v405 = vcombine.high %v381, 0.0
  %v406 = vcombine.high %v388, 0.0
  %v407 = vcombine.high %v397, 0.0
  %v408 = vcombine.high %v404, 0.0
  %v409 = vcombine.low %v381, %v388
  %v411 = vunpack.c.l.s4 1983009808
  %v412 = vunpack.c.0.s8 %v411
  %v413 = vlaneseq
  %v414 = vshrl.u32 %v413, 7
  %v415 = vsub.s32 %v412, %v414
  %v416 = vrot.slane %v409, %v415
  %v417 = vcombine.low %v405, %v406
  %v419 = vunpack.c.l.s4 1983009808
  %v420 = vunpack.c.0.s8 %v419
  %v421 = vlaneseq
  %v422 = vshrl.u32 %v421, 7
  %v423 = vsub.s32 %v420, %v422
  %v424 = vrot.slane %v417, %v423
  %v425 = vcombine.low %v397, %v404
  %v427 = vunpack.c.l.s4 1983009808
  %v428 = vunpack.c.0.s8 %v427
  %v429 = vlaneseq
  %v430 = vshrl.u32 %v429, 7
  %v431 = vsub.s32 %v428, %v430
  %v432 = vrot.slane %v425, %v431
  %v433 = vcombine.low %v407, %v408
  %v435 = vunpack.c.l.s4 1983009808
  %v436 = vunpack.c.0.s8 %v435
  %v437 = vlaneseq
  %v438 = vshrl.u32 %v437, 7
  %v439 = vsub.s32 %v436, %v438
  %v440 = vrot.slane %v433, %v439
  %v441 = vcombine.low %v416, %v424
  %v442 = vcombine.high %v416, %v424
  %v444 = vunpack.c.l.s4 1934713408
  %v445 = vunpack.c.0.s8 %v444
  %v446 = vlaneseq
  %v447 = vshrl.u32 %v446, 7
  %v448 = vsub.s32 %v445, %v447
  %v449 = vrot.slane %v441, %v448
  %v451 = vunpack.c.l.s4 1934713408
  %v452 = vunpack.c.0.s8 %v451
  %v453 = vlaneseq
  %v454 = vshrl.u32 %v453, 7
  %v455 = vsub.s32 %v452, %v454
  %v456 = vrot.slane %v442, %v455
  %v457 = vcombine.low %v432, %v440
  %v458 = vcombine.high %v432, %v440
  %v460 = vunpack.c.l.s4 1934713408
  %v461 = vunpack.c.0.s8 %v460
  %v462 = vlaneseq
  %v463 = vshrl.u32 %v462, 7
  %v464 = vsub.s32 %v461, %v463
  %v465 = vrot.slane %v457, %v464
  %v467 = vunpack.c.l.s4 1934713408
  %v468 = vunpack.c.0.s8 %v467
  %v469 = vlaneseq
  %v470 = vshrl.u32 %v469, 7
  %v471 = vsub.s32 %v468, %v470
  %v472 = vrot.slane %v458, %v471
  %v473 = vcombine.low %v449, %v465
  %v474 = vcombine.high %v449, %v465
  %v475 = vcombine.low %v456, %v472
  %v476 = vcombine.high %v456, %v472
  %v477 = vpack.c.bf16 %v473, %v473
  %v478 = vpack.c.bf16 %v474, %v474
  %v479 = vpack.c.bf16 %v475, %v475
  %v480 = vpack.c.bf16 %v476, %v476
  %vm481 = vcmask 64512
  %v483 = vsel %vm481, %v177, 0
  %v486 = vsel %vm481, %v327, 0
  %488 = vmatprep.subr.bf16.mxu0 0
  %489 = vmatpush1.bf16.xpose.msra.mxu0 0
  %490 = vmatprep.subr.bf16.mxu0 0
  %491 = vmatpush1.bf16.xpose.msra.mxu0 0
  %492 = vmatprep.subr.bf16.mxu0 0
  %493 = vmatpush1.bf16.xpose.msra.mxu0 0
  %494 = vmatprep.subr.bf16.mxu0 0
  %495 = vmatpush1.bf16.xpose.msra.mxu0 0
  %496 = vmatprep.subr.bf16.mxu0 0
  %497 = vmatpush1.bf16.xpose.msra.mxu0 0
  %498 = vmatprep.subr.bf16.mxu0 0
  %499 = vmatpush1.bf16.xpose.msra.mxu0 0
  %500 = vmatprep.subr.bf16.mxu0 0
  %501 = vmatpush1.bf16.xpose.msra.mxu0 0
  %502 = vmatprep.subr.bf16.mxu0 0
  %503 = vmatpush1.bf16.xpose.msra.mxu0 %v486
  %504 = vmatprep.subr.bf16.mxu0 0
  %505 = vmatpush2.bf16.xpose.msra.mxu0 0
  %506 = vmatprep.subr.bf16.mxu0 0
  %507 = vmatpush2.bf16.xpose.msra.mxu0 0
  %508 = vmatprep.subr.bf16.mxu0 0
  %509 = vmatpush2.bf16.xpose.msra.mxu0 0
  %510 = vmatprep.subr.bf16.mxu0 0
  %511 = vmatpush2.bf16.xpose.msra.mxu0 0
  %512 = vmatprep.subr.bf16.mxu0 0
  %513 = vmatpush2.bf16.xpose.msra.mxu0 0
  %514 = vmatprep.subr.bf16.mxu0 0
  %515 = vmatpush2.bf16.xpose.msra.mxu0 0
  %516 = vmatprep.subr.bf16.mxu0 0
  %517 = vmatpush2.bf16.xpose.msra.mxu0 0
  %518 = vmatprep.subr.bf16.mxu0 0
  %519 = vmatpush2.bf16.xpose.msra.mxu0 0
  %520 = vmatprep.mubr.bf16.mxu0 0
  %521 = vmatmul.mubr.bf16.gmra.mxu0 %v483
  %v522 = vpop.f32.mrf.mxu0
  %v523 = vadd.f32 0.0, %v522
  %v524 = vpop.f32.mrf.mxu0
  %v525 = vpop.f32.mrf.mxu0
  %v526 = vpop.f32.mrf.mxu0
  %527 = vdwg.mxu0
  %v529 = vsel %vm481, %v178, 0
  %v532 = vsel %vm481, %v328, 0
  %534 = vmatprep.subr.bf16.mxu0 0
  %535 = vmatpush1.bf16.xpose.msra.mxu0 0
  %536 = vmatprep.subr.bf16.mxu0 0
  %537 = vmatpush1.bf16.xpose.msra.mxu0 0
  %538 = vmatprep.subr.bf16.mxu0 0
  %539 = vmatpush1.bf16.xpose.msra.mxu0 0
  %540 = vmatprep.subr.bf16.mxu0 0
  %541 = vmatpush1.bf16.xpose.msra.mxu0 0
  %542 = vmatprep.subr.bf16.mxu0 0
  %543 = vmatpush1.bf16.xpose.msra.mxu0 0
  %544 = vmatprep.subr.bf16.mxu0 0
  %545 = vmatpush1.bf16.xpose.msra.mxu0 0
  %546 = vmatprep.subr.bf16.mxu0 0
  %547 = vmatpush1.bf16.xpose.msra.mxu0 0
  %548 = vmatprep.subr.bf16.mxu0 0
  %549 = vmatpush1.bf16.xpose.msra.mxu0 %v532
  %550 = vmatprep.subr.bf16.mxu0 0
  %551 = vmatpush2.bf16.xpose.msra.mxu0 0
  %552 = vmatprep.subr.bf16.mxu0 0
  %553 = vmatpush2.bf16.xpose.msra.mxu0 0
  %554 = vmatprep.subr.bf16.mxu0 0
  %555 = vmatpush2.bf16.xpose.msra.mxu0 0
  %556 = vmatprep.subr.bf16.mxu0 0
  %557 = vmatpush2.bf16.xpose.msra.mxu0 0
  %558 = vmatprep.subr.bf16.mxu0 0
  %559 = vmatpush2.bf16.xpose.msra.mxu0 0
  %560 = vmatprep.subr.bf16.mxu0 0
  %561 = vmatpush2.bf16.xpose.msra.mxu0 0
  %562 = vmatprep.subr.bf16.mxu0 0
  %563 = vmatpush2.bf16.xpose.msra.mxu0 0
  %564 = vmatprep.subr.bf16.mxu0 0
  %565 = vmatpush2.bf16.xpose.msra.mxu0 0
  %566 = vmatprep.mubr.bf16.mxu0 0
  %567 = vmatmul.mubr.bf16.gmra.mxu0 %v529
  %v568 = vpop.f32.mrf.mxu0
  %v569 = vadd.f32 0.0, %v568
  %v570 = vpop.f32.mrf.mxu0
  %v571 = vpop.f32.mrf.mxu0
  %v572 = vpop.f32.mrf.mxu0
  %573 = vdwg.mxu0
  %v575 = vsel %vm481, %v179, 0
  %v578 = vsel %vm481, %v329, 0
  %580 = vmatprep.subr.bf16.mxu0 0
  %581 = vmatpush1.bf16.xpose.msra.mxu0 0
  %582 = vmatprep.subr.bf16.mxu0 0
  %583 = vmatpush1.bf16.xpose.msra.mxu0 0
  %584 = vmatprep.subr.bf16.mxu0 0
  %585 = vmatpush1.bf16.xpose.msra.mxu0 0
  %586 = vmatprep.subr.bf16.mxu0 0
  %587 = vmatpush1.bf16.xpose.msra.mxu0 0
  %588 = vmatprep.subr.bf16.mxu0 0
  %589 = vmatpush1.bf16.xpose.msra.mxu0 0
  %590 = vmatprep.subr.bf16.mxu0 0
  %591 = vmatpush1.bf16.xpose.msra.mxu0 0
  %592 = vmatprep.subr.bf16.mxu0 0
  %593 = vmatpush1.bf16.xpose.msra.mxu0 0
  %594 = vmatprep.subr.bf16.mxu0 0
  %595 = vmatpush1.bf16.xpose.msra.mxu0 %v578
  %596 = vmatprep.subr.bf16.mxu0 0
  %597 = vmatpush2.bf16.xpose.msra.mxu0 0
  %598 = vmatprep.subr.bf16.mxu0 0
  %599 = vmatpush2.bf16.xpose.msra.mxu0 0
  %600 = vmatprep.subr.bf16.mxu0 0
  %601 = vmatpush2.bf16.xpose.msra.mxu0 0
  %602 = vmatprep.subr.bf16.mxu0 0
  %603 = vmatpush2.bf16.xpose.msra.mxu0 0
  %604 = vmatprep.subr.bf16.mxu0 0
  %605 = vmatpush2.bf16.xpose.msra.mxu0 0
  %606 = vmatprep.subr.bf16.mxu0 0
  %607 = vmatpush2.bf16.xpose.msra.mxu0 0
  %608 = vmatprep.subr.bf16.mxu0 0
  %609 = vmatpush2.bf16.xpose.msra.mxu0 0
  %610 = vmatprep.subr.bf16.mxu0 0
  %611 = vmatpush2.bf16.xpose.msra.mxu0 0
  %612 = vmatprep.mubr.bf16.mxu0 0
  %613 = vmatmul.mubr.bf16.gmra.mxu0 %v575
  %v614 = vpop.f32.mrf.mxu0
  %v615 = vadd.f32 0.0, %v614
  %v616 = vpop.f32.mrf.mxu0
  %v617 = vpop.f32.mrf.mxu0
  %v618 = vpop.f32.mrf.mxu0
  %619 = vdwg.mxu0
  %v621 = vsel %vm481, %v180, 0
  %v624 = vsel %vm481, %v330, 0
  %626 = vmatprep.subr.bf16.mxu0 0
  %627 = vmatpush1.bf16.xpose.msra.mxu0 0
  %628 = vmatprep.subr.bf16.mxu0 0
  %629 = vmatpush1.bf16.xpose.msra.mxu0 0
  %630 = vmatprep.subr.bf16.mxu0 0
  %631 = vmatpush1.bf16.xpose.msra.mxu0 0
  %632 = vmatprep.subr.bf16.mxu0 0
  %633 = vmatpush1.bf16.xpose.msra.mxu0 0
  %634 = vmatprep.subr.bf16.mxu0 0
  %635 = vmatpush1.bf16.xpose.msra.mxu0 0
  %636 = vmatprep.subr.bf16.mxu0 0
  %637 = vmatpush1.bf16.xpose.msra.mxu0 0
  %638 = vmatprep.subr.bf16.mxu0 0
  %639 = vmatpush1.bf16.xpose.msra.mxu0 0
  %640 = vmatprep.subr.bf16.mxu0 0
  %641 = vmatpush1.bf16.xpose.msra.mxu0 %v624
  %642 = vmatprep.subr.bf16.mxu0 0
  %643 = vmatpush2.bf16.xpose.msra.mxu0 0
  %644 = vmatprep.subr.bf16.mxu0 0
  %645 = vmatpush2.bf16.xpose.msra.mxu0 0
  %646 = vmatprep.subr.bf16.mxu0 0
  %647 = vmatpush2.bf16.xpose.msra.mxu0 0
  %648 = vmatprep.subr.bf16.mxu0 0
  %649 = vmatpush2.bf16.xpose.msra.mxu0 0
  %650 = vmatprep.subr.bf16.mxu0 0
  %651 = vmatpush2.bf16.xpose.msra.mxu0 0
  %652 = vmatprep.subr.bf16.mxu0 0
  %653 = vmatpush2.bf16.xpose.msra.mxu0 0
  %654 = vmatprep.subr.bf16.mxu0 0
  %655 = vmatpush2.bf16.xpose.msra.mxu0 0
  %656 = vmatprep.subr.bf16.mxu0 0
  %657 = vmatpush2.bf16.xpose.msra.mxu0 0
  %658 = vmatprep.mubr.bf16.mxu0 0
  %659 = vmatmul.mubr.bf16.gmra.mxu0 %v621
  %v660 = vpop.f32.mrf.mxu0
  %v661 = vadd.f32 0.0, %v660
  %v662 = vpop.f32.mrf.mxu0
  %v663 = vpop.f32.mrf.mxu0
  %v664 = vpop.f32.mrf.mxu0
  %665 = vdwg.mxu0
  %v666 = vsel %vm481, %v523, -inf
  %667 = vmax.xlane.f32.xlu0 %v666
  %v668 = vpop.xlane.xlu0 %667
  %v669 = vsel %vm481, %v569, -inf
  %670 = vmax.xlane.f32.xlu0 %v669
  %v671 = vpop.xlane.xlu0 %670
  %v672 = vsel %vm481, %v615, -inf
  %673 = vmax.xlane.f32.xlu0 %v672
  %v674 = vpop.xlane.xlu0 %673
  %v675 = vsel %vm481, %v661, -inf
  %676 = vmax.xlane.f32.xlu0 %v675
  %v677 = vpop.xlane.xlu0 %676
  %v678 = vsub.f32 %v523, %v668
  %v679 = vsub.f32 %v569, %v671
  %v680 = vsub.f32 %v615, %v674
  %v681 = vsub.f32 %v661, %v677
  %v682 = vmul.f32 %v678, 1.442695
  %v683 = vpow.pop %v682
  %v684 = vmul.f32 %v679, 1.442695
  %v685 = vpow.pop %v684
  %v686 = vmul.f32 %v680, 1.442695
  %v687 = vpow.pop %v686
  %v688 = vmul.f32 %v681, 1.442695
  %v689 = vpow.pop %v688
  %v690 = vsel %vm481, %v683, 0.0
  %691 = vadd.xlane.f32.xlu0 %v690
  %v692 = vpop.xlane.xlu0 %691
  %v693 = vsel %vm481, %v685, 0.0
  %694 = vadd.xlane.f32.xlu0 %v693
  %v695 = vpop.xlane.xlu0 %694
  %v696 = vsel %vm481, %v687, 0.0
  %697 = vadd.xlane.f32.xlu0 %v696
  %v698 = vpop.xlane.xlu0 %697
  %v699 = vsel %vm481, %v689, 0.0
  %700 = vadd.xlane.f32.xlu0 %v699
  %v701 = vpop.xlane.xlu0 %700
  %v702 = vrcp.pop %v692
  %v703 = vrcp.pop %v695
  %v704 = vrcp.pop %v698
  %v705 = vrcp.pop %v701
  %v706 = vmul.f32 %v683, %v702
  %v707 = vmul.f32 %v685, %v703
  %v708 = vmul.f32 %v687, %v704
  %v709 = vmul.f32 %v689, %v705
  %v710 = vpack.c.bf16 %v706, %v706
  %v711 = vpack.c.bf16 %v707, %v707
  %v712 = vpack.c.bf16 %v708, %v708
  %v713 = vpack.c.bf16 %v709, %v709
  %v715 = vsel %vm481, %v710, 0
  %vm717 = vcmask 1043456
  %v719 = vsel %vm717, %v477, 0
  %721 = vmatprep.subr.bf16.mxu0 0
  %722 = vmatpush1.bf16.msra.mxu0 0
  %723 = vmatprep.subr.bf16.mxu0 0
  %724 = vmatpush1.bf16.msra.mxu0 0
  %725 = vmatprep.subr.bf16.mxu0 0
  %726 = vmatpush1.bf16.msra.mxu0 0
  %727 = vmatprep.subr.bf16.mxu0 0
  %728 = vmatpush1.bf16.msra.mxu0 0
  %729 = vmatprep.subr.bf16.mxu0 0
  %730 = vmatpush1.bf16.msra.mxu0 0
  %731 = vmatprep.subr.bf16.mxu0 0
  %732 = vmatpush1.bf16.msra.mxu0 0
  %733 = vmatprep.subr.bf16.mxu0 0
  %734 = vmatpush1.bf16.msra.mxu0 0
  %735 = vmatprep.subr.bf16.mxu0 0
  %736 = vmatpush1.bf16.msra.mxu0 %v719
  %737 = vmatprep.subr.bf16.mxu0 0
  %738 = vmatpush2.bf16.msra.mxu0 0
  %739 = vmatprep.subr.bf16.mxu0 0
  %740 = vmatpush2.bf16.msra.mxu0 0
  %741 = vmatprep.subr.bf16.mxu0 0
  %742 = vmatpush2.bf16.msra.mxu0 0
  %743 = vmatprep.subr.bf16.mxu0 0
  %744 = vmatpush2.bf16.msra.mxu0 0
  %745 = vmatprep.subr.bf16.mxu0 0
  %746 = vmatpush2.bf16.msra.mxu0 0
  %747 = vmatprep.subr.bf16.mxu0 0
  %748 = vmatpush2.bf16.msra.mxu0 0
  %749 = vmatprep.subr.bf16.mxu0 0
  %750 = vmatpush2.bf16.msra.mxu0 0
  %751 = vmatprep.subr.bf16.mxu0 0
  %752 = vmatpush2.bf16.msra.mxu0 0
  %753 = vmatprep.mubr.bf16.mxu0 0
  %754 = vmatmul.mubr.bf16.gmra.mxu0 %v715
  %v755 = vpop.f32.mrf.mxu0
  %v756 = vadd.f32 0.0, %v755
  %v757 = vpop.f32.mrf.mxu0
  %v758 = vpop.f32.mrf.mxu0
  %v759 = vpop.f32.mrf.mxu0
  %760 = vdwg.mxu0
  %v762 = vsel %vm481, %v711, 0
  %v765 = vsel %vm717, %v478, 0
  %767 = vmatprep.subr.bf16.mxu0 0
  %768 = vmatpush1.bf16.msra.mxu0 0
  %769 = vmatprep.subr.bf16.mxu0 0
  %770 = vmatpush1.bf16.msra.mxu0 0
  %771 = vmatprep.subr.bf16.mxu0 0
  %772 = vmatpush1.bf16.msra.mxu0 0
  %773 = vmatprep.subr.bf16.mxu0 0
  %774 = vmatpush1.bf16.msra.mxu0 0
  %775 = vmatprep.subr.bf16.mxu0 0
  %776 = vmatpush1.bf16.msra.mxu0 0
  %777 = vmatprep.subr.bf16.mxu0 0
  %778 = vmatpush1.bf16.msra.mxu0 0
  %779 = vmatprep.subr.bf16.mxu0 0
  %780 = vmatpush1.bf16.msra.mxu0 0
  %781 = vmatprep.subr.bf16.mxu0 0
  %782 = vmatpush1.bf16.msra.mxu0 %v765
  %783 = vmatprep.subr.bf16.mxu0 0
  %784 = vmatpush2.bf16.msra.mxu0 0
  %785 = vmatprep.subr.bf16.mxu0 0
  %786 = vmatpush2.bf16.msra.mxu0 0
  %787 = vmatprep.subr.bf16.mxu0 0
  %788 = vmatpush2.bf16.msra.mxu0 0
  %789 = vmatprep.subr.bf16.mxu0 0
  %790 = vmatpush2.bf16.msra.mxu0 0
  %791 = vmatprep.subr.bf16.mxu0 0
  %792 = vmatpush2.bf16.msra.mxu0 0
  %793 = vmatprep.subr.bf16.mxu0 0
  %794 = vmatpush2.bf16.msra.mxu0 0
  %795 = vmatprep.subr.bf16.mxu0 0
  %796 = vmatpush2.bf16.msra.mxu0 0
  %797 = vmatprep.subr.bf16.mxu0 0
  %798 = vmatpush2.bf16.msra.mxu0 0
  %799 = vmatprep.mubr.bf16.mxu0 0
  %800 = vmatmul.mubr.bf16.gmra.mxu0 %v762
  %v801 = vpop.f32.mrf.mxu0
  %v802 = vadd.f32 0.0, %v801
  %v803 = vpop.f32.mrf.mxu0
  %v804 = vpop.f32.mrf.mxu0
  %v805 = vpop.f32.mrf.mxu0
  %806 = vdwg.mxu0
  %v808 = vsel %vm481, %v712, 0
  %v811 = vsel %vm717, %v479, 0
  %813 = vmatprep.subr.bf16.mxu0 0
  %814 = vmatpush1.bf16.msra.mxu0 0
  %815 = vmatprep.subr.bf16.mxu0 0
  %816 = vmatpush1.bf16.msra.mxu0 0
  %817 = vmatprep.subr.bf16.mxu0 0
  %818 = vmatpush1.bf16.msra.mxu0 0
  %819 = vmatprep.subr.bf16.mxu0 0
  %820 = vmatpush1.bf16.msra.mxu0 0
  %821 = vmatprep.subr.bf16.mxu0 0
  %822 = vmatpush1.bf16.msra.mxu0 0
  %823 = vmatprep.subr.bf16.mxu0 0
  %824 = vmatpush1.bf16.msra.mxu0 0
  %825 = vmatprep.subr.bf16.mxu0 0
  %826 = vmatpush1.bf16.msra.mxu0 0
  %827 = vmatprep.subr.bf16.mxu0 0
  %828 = vmatpush1.bf16.msra.mxu0 %v811
  %829 = vmatprep.subr.bf16.mxu0 0
  %830 = vmatpush2.bf16.msra.mxu0 0
  %831 = vmatprep.subr.bf16.mxu0 0
  %832 = vmatpush2.bf16.msra.mxu0 0
  %833 = vmatprep.subr.bf16.mxu0 0
  %834 = vmatpush2.bf16.msra.mxu0 0
  %835 = vmatprep.subr.bf16.mxu0 0
  %836 = vmatpush2.bf16.msra.mxu0 0
  %837 = vmatprep.subr.bf16.mxu0 0
  %838 = vmatpush2.bf16.msra.mxu0 0
  %839 = vmatprep.subr.bf16.mxu0 0
  %840 = vmatpush2.bf16.msra.mxu0 0
  %841 = vmatprep.subr.bf16.mxu0 0
  %842 = vmatpush2.bf16.msra.mxu0 0
  %843 = vmatprep.subr.bf16.mxu0 0
  %844 = vmatpush2.bf16.msra.mxu0 0
  %845 = vmatprep.mubr.bf16.mxu0 0
  %846 = vmatmul.mubr.bf16.gmra.mxu0 %v808
  %v847 = vpop.f32.mrf.mxu0
  %v848 = vadd.f32 0.0, %v847
  %v849 = vpop.f32.mrf.mxu0
  %v850 = vpop.f32.mrf.mxu0
  %v851 = vpop.f32.mrf.mxu0
  %852 = vdwg.mxu0
  %v854 = vsel %vm481, %v713, 0
  %v857 = vsel %vm717, %v480, 0
  %859 = vmatprep.subr.bf16.mxu0 0
  %860 = vmatpush1.bf16.msra.mxu0 0
  %861 = vmatprep.subr.bf16.mxu0 0
  %862 = vmatpush1.bf16.msra.mxu0 0
  %863 = vmatprep.subr.bf16.mxu0 0
  %864 = vmatpush1.bf16.msra.mxu0 0
  %865 = vmatprep.subr.bf16.mxu0 0
  %866 = vmatpush1.bf16.msra.mxu0 0
  %867 = vmatprep.subr.bf16.mxu0 0
  %868 = vmatpush1.bf16.msra.mxu0 0
  %869 = vmatprep.subr.bf16.mxu0 0
  %870 = vmatpush1.bf16.msra.mxu0 0
  %871 = vmatprep.subr.bf16.mxu0 0
  %872 = vmatpush1.bf16.msra.mxu0 0
  %873 = vmatprep.subr.bf16.mxu0 0
  %874 = vmatpush1.bf16.msra.mxu0 %v857
  %875 = vmatprep.subr.bf16.mxu0 0
  %876 = vmatpush2.bf16.msra.mxu0 0
  %877 = vmatprep.subr.bf16.mxu0 0
  %878 = vmatpush2.bf16.msra.mxu0 0
  %879 = vmatprep.subr.bf16.mxu0 0
  %880 = vmatpush2.bf16.msra.mxu0 0
  %881 = vmatprep.subr.bf16.mxu0 0
  %882 = vmatpush2.bf16.msra.mxu0 0
  %883 = vmatprep.subr.bf16.mxu0 0
  %884 = vmatpush2.bf16.msra.mxu0 0
  %885 = vmatprep.subr.bf16.mxu0 0
  %886 = vmatpush2.bf16.msra.mxu0 0
  %887 = vmatprep.subr.bf16.mxu0 0
  %888 = vmatpush2.bf16.msra.mxu0 0
  %889 = vmatprep.subr.bf16.mxu0 0
  %890 = vmatpush2.bf16.msra.mxu0 0
  %891 = vmatprep.mubr.bf16.mxu0 0
  %892 = vmatmul.mubr.bf16.gmra.mxu0 %v854
  %v893 = vpop.f32.mrf.mxu0
  %v894 = vadd.f32 0.0, %v893
  %v895 = vpop.f32.mrf.mxu0
  %v896 = vpop.f32.mrf.mxu0
  %v897 = vpop.f32.mrf.mxu0
  %898 = vdwg.mxu0
  %v899 = vcombine.low %v756, %v848
  %v900 = vcombine.high %v756, %v848
  %v902 = vunpack.c.l.s4 1983009808
  %v903 = vunpack.c.0.s8 %v902
  %v904 = vlaneseq
  %v905 = vshrl.u32 %v904, 7
  %v906 = vsub.s32 %v903, %v905
  %v907 = vrot.slane %v899, %v906
  %v909 = vunpack.c.l.s4 1983009808
  %v910 = vunpack.c.0.s8 %v909
  %v911 = vlaneseq
  %v912 = vshrl.u32 %v911, 7
  %v913 = vsub.s32 %v910, %v912
  %v914 = vrot.slane %v900, %v913
  %v915 = vcombine.low %v802, %v894
  %v916 = vcombine.high %v802, %v894
  %v918 = vunpack.c.l.s4 1983009808
  %v919 = vunpack.c.0.s8 %v918
  %v920 = vlaneseq
  %v921 = vshrl.u32 %v920, 7
  %v922 = vsub.s32 %v919, %v921
  %v923 = vrot.slane %v915, %v922
  %v925 = vunpack.c.l.s4 1983009808
  %v926 = vunpack.c.0.s8 %v925
  %v927 = vlaneseq
  %v928 = vshrl.u32 %v927, 7
  %v929 = vsub.s32 %v926, %v928
  %v930 = vrot.slane %v916, %v929
  %v931 = vcombine.low %v907, %v923
  %v932 = vcombine.high %v907, %v923
  %v934 = vunpack.c.l.s4 1934713408
  %v935 = vunpack.c.0.s8 %v934
  %v936 = vlaneseq
  %v937 = vshrl.u32 %v936, 7
  %v938 = vsub.s32 %v935, %v937
  %v939 = vrot.slane %v931, %v938
  %v941 = vunpack.c.l.s4 1934713408
  %v942 = vunpack.c.0.s8 %v941
  %v943 = vlaneseq
  %v944 = vshrl.u32 %v943, 7
  %v945 = vsub.s32 %v942, %v944
  %v946 = vrot.slane %v932, %v945
  %v947 = vcombine.low %v914, %v930
  %v948 = vcombine.high %v914, %v930
  %v950 = vunpack.c.l.s4 1934713408
  %v951 = vunpack.c.0.s8 %v950
  %v952 = vlaneseq
  %v953 = vshrl.u32 %v952, 7
  %v954 = vsub.s32 %v951, %v953
  %v955 = vrot.slane %v947, %v954
  %v957 = vunpack.c.l.s4 1934713408
  %v958 = vunpack.c.0.s8 %v957
  %v959 = vlaneseq
  %v960 = vshrl.u32 %v959, 7
  %v961 = vsub.s32 %v958, %v960
  %v962 = vrot.slane %v948, %v961
  %v963 = vcombine.high %v939, 0.0
  %v964 = vcombine.high %v946, 0.0
  %v965 = vcombine.high %v955, 0.0
  %v966 = vcombine.high %v962, 0.0
  %v967 = vcombine.low %v939, %v946
  %v969 = vunpack.c.l.s4 1983009808
  %v970 = vunpack.c.0.s8 %v969
  %v971 = vlaneseq
  %v972 = vshrl.u32 %v971, 7
  %v973 = vsub.s32 %v970, %v972
  %v974 = vrot.slane %v967, %v973
  %v975 = vcombine.low %v963, %v964
  %v977 = vunpack.c.l.s4 1983009808
  %v978 = vunpack.c.0.s8 %v977
  %v979 = vlaneseq
  %v980 = vshrl.u32 %v979, 7
  %v981 = vsub.s32 %v978, %v980
  %v982 = vrot.slane %v975, %v981
  %v983 = vcombine.low %v955, %v962
  %v985 = vunpack.c.l.s4 1983009808
  %v986 = vunpack.c.0.s8 %v985
  %v987 = vlaneseq
  %v988 = vshrl.u32 %v987, 7
  %v989 = vsub.s32 %v986, %v988
  %v990 = vrot.slane %v983, %v989
  %v991 = vcombine.low %v965, %v966
  %v993 = vunpack.c.l.s4 1983009808
  %v994 = vunpack.c.0.s8 %v993
  %v995 = vlaneseq
  %v996 = vshrl.u32 %v995, 7
  %v997 = vsub.s32 %v994, %v996
  %v998 = vrot.slane %v991, %v997
  %v999 = vcombine.low %v974, %v982
  %v1000 = vcombine.high %v974, %v982
  %v1002 = vunpack.c.l.s4 1934713408
  %v1003 = vunpack.c.0.s8 %v1002
  %v1004 = vlaneseq
  %v1005 = vshrl.u32 %v1004, 7
  %v1006 = vsub.s32 %v1003, %v1005
  %v1007 = vrot.slane %v999, %v1006
  %v1009 = vunpack.c.l.s4 1934713408
  %v1010 = vunpack.c.0.s8 %v1009
  %v1011 = vlaneseq
  %v1012 = vshrl.u32 %v1011, 7
  %v1013 = vsub.s32 %v1010, %v1012
  %v1014 = vrot.slane %v1000, %v1013
  %v1015 = vcombine.low %v990, %v998
  %v1016 = vcombine.high %v990, %v998
  %v1018 = vunpack.c.l.s4 1934713408
  %v1019 = vunpack.c.0.s8 %v1018
  %v1020 = vlaneseq
  %v1021 = vshrl.u32 %v1020, 7
  %v1022 = vsub.s32 %v1019, %v1021
  %v1023 = vrot.slane %v1015, %v1022
  %v1025 = vunpack.c.l.s4 1934713408
  %v1026 = vunpack.c.0.s8 %v1025
  %v1027 = vlaneseq
  %v1028 = vshrl.u32 %v1027, 7
  %v1029 = vsub.s32 %v1026, %v1028
  %v1030 = vrot.slane %v1016, %v1029
  %v1031 = vcombine.low %v1007, %v1023
  %v1032 = vcombine.high %v1007, %v1023
  %v1033 = vcombine.low %v1014, %v1030
  %v1034 = vcombine.high %v1014, %v1030
  %1036 = vrot.lane.b32.xlu0 %v1032, 8
  %v1037 = vpop.permute.xlu0 %1036
  %1040 = vrot.lane.b32.xlu0 %v1033, 16
  %v1041 = vpop.permute.xlu0 %1040
  %1044 = vrot.lane.b32.xlu0 %v1034, 24
  %v1045 = vpop.permute.xlu0 %1044
  %v1047 = vsel %vm481, %v1031, %v1037
  %vm1048 = vcmask 130048
  %v1049 = vsel %vm1048, %v1047, %v1041
  %vm1050 = vcmask 195584
  %v1051 = vsel %vm1050, %v1049, %v1045
  %v1052 = vpack.c.bf16 %v1051, %v1051
  %v1053 = vld [vmem:[%s4] sm:$0xf]
  %v1054 = vld [vmem:[%s4 + $0x4] sm:$0xf]
  %v1055 = vld [vmem:[%s4 + $0x8] sm:$0xf]
  %v1056 = vld [vmem:[%s4 + $0xc] sm:$0xf]
  %v1057 = vld [vmem:[%s5] sm:$0x1]
  %v1059 = vlaneseq
  %v1060 = vshrl.u32 %v1059, 7
  %v1061 = vsub.s32 0, %v1060
  %v1062 = vrot.slane %v1057, %v1061
  %v1068 = vunpack.c.l.b16 %v1053
  %v1069 = vunpack.c.l.b16 %v1054
  %v1070 = vunpack.c.l.b16 %v1055
  %v1071 = vunpack.c.l.b16 %v1056
  %v1072 = vpack.c.b16 %v1069, %v1068
  %v1073 = vpack.c.b16 %v1071, %v1070
  %vm1076 = vcmask 261120
  %v1078 = vsel %vm1076, %v1052, 0
  %1080 = vmatprep.subr.bf16.mxu0 0
  %1081 = vmatpush1.bf16.msra.mxu0 0
  %1082 = vmatprep.subr.bf16.mxu0 0
  %1083 = vmatpush1.bf16.msra.mxu0 0
  %1084 = vmatprep.subr.bf16.mxu0 0
  %1085 = vmatpush1.bf16.msra.mxu0 0
  %1086 = vmatprep.subr.bf16.mxu0 0
  %1087 = vmatpush1.bf16.msra.mxu0 0
  %1088 = vmatprep.subr.bf16.mxu0 0
  %1089 = vmatpush1.bf16.msra.mxu0 0
  %1090 = vmatprep.subr.bf16.mxu0 0
  %1091 = vmatpush1.bf16.msra.mxu0 0
  %1092 = vmatprep.subr.bf16.mxu0 0
  %1093 = vmatpush1.bf16.msra.mxu0 %v1073
  %1094 = vmatprep.subr.bf16.mxu0 0
  %1095 = vmatpush1.bf16.msra.mxu0 %v1072
  %1096 = vmatprep.subr.bf16.mxu0 0
  %1097 = vmatpush2.bf16.msra.mxu0 0
  %1098 = vmatprep.subr.bf16.mxu0 0
  %1099 = vmatpush2.bf16.msra.mxu0 0
  %1100 = vmatprep.subr.bf16.mxu0 0
  %1101 = vmatpush2.bf16.msra.mxu0 0
  %1102 = vmatprep.subr.bf16.mxu0 0
  %1103 = vmatpush2.bf16.msra.mxu0 0
  %1104 = vmatprep.subr.bf16.mxu0 0
  %1105 = vmatpush2.bf16.msra.mxu0 0
  %1106 = vmatprep.subr.bf16.mxu0 0
  %1107 = vmatpush2.bf16.msra.mxu0 0
  %1108 = vmatprep.subr.bf16.mxu0 0
  %1109 = vmatpush2.bf16.msra.mxu0 0
  %1110 = vmatprep.subr.bf16.mxu0 0
  %1111 = vmatpush2.bf16.msra.mxu0 0
  %1112 = vmatprep.mubr.bf16.mxu0 0
  %1113 = vmatmul.mubr.bf16.gmra.mxu0 %v1078
  %v1114 = vpop.f32.mrf.mxu0
  %v1115 = vadd.f32 %v1062, %v1114
  %v1116 = vpop.f32.mrf.mxu0
  %v1117 = vpop.f32.mrf.mxu0
  %v1118 = vpop.f32.mrf.mxu0
  %1119 = vdwg.mxu0
  %v1120 = vadd.f32 %v24, %v1115
  %1121 = vst.msk [vmem:[%s6] sm:$0xff] %vm1076, %v1120
  // Predicated region
  $region26: #{group_token_transformer_encoder.7} parent=0 // pred_check
    _
  $region27: #{group_token_transformer_encoder.7} parent=0 // pred_check_branch
    %1123 = sbr.rel (0) target = $region29
  $region28: #{group_token_transformer_encoder.7} parent=0 // pred_region
    _
  $region29: #{group_token_transformer_encoder.7} parent=0 // pred_fallthru
    _
  // Predicated region
  $region30: #{group_token_transformer_encoder.7} parent=0 // pred_check
    _
  $region31: #{group_token_transformer_encoder.7} parent=0 // pred_check_branch
    %1125 = sbr.rel (0) target = $region33
  $region32: #{group_token_transformer_encoder.7} parent=0 // pred_region
    _
  $region33: #{group_token_transformer_encoder.7} parent=0 // pred_fallthru
    _

// kernel: group_token_transformer_encoder.11
$region0: #{group_token_transformer_encoder.11}
  #allocation0 [shape = 'u32[]', space=smem, size = 0x4, offset = 0x4, fixed_abs, tag = 'smem constant byte address 0x4 - core index']
  #allocation1 [shape = 'u32[144,128]{1,0:T(1,128)}', space=vmem, size = 0x12000, scoped, tag = 'internal scratch']
  #allocation2 [shape = 'bf16[8,32]{1,0:T(8,128)(2,1)}', space=vmem, size = 0x800, scoped, tag = 'scratch operand']
  #allocation3 [shape = 'f32[8,32]{1,0:T(8,128)}', space=vmem, size = 0x1000, scoped, tag = 'scratch operand']
  %s0 = inlined_call_operand.vmem [shape: f32[8,32], index: 0, kind: input, shape index: {}, may-alias: {0,9}]
  %s1 = inlined_call_operand.vmem [shape: f32[1,32], index: 1, kind: input, shape index: {}]
  %s2 = inlined_call_operand.vmem [shape: f32[1,32], index: 2, kind: input, shape index: {}]
  %s3 = inlined_call_operand.vmem [shape: bf16[32,128], index: 3, kind: input, shape index: {}]
  %s4 = inlined_call_operand.vmem [shape: f32[1,128], index: 4, kind: input, shape index: {}]
  %s5 = inlined_call_operand.vmem [shape: bf16[128,32], index: 5, kind: input, shape index: {}]
  %s6 = inlined_call_operand.vmem [shape: f32[1,32], index: 6, kind: input, shape index: {}]
  %s7 = inlined_call_operand.vmem [shape: f32[1,32], index: 7, kind: input, shape index: {}]
  %s8 = inlined_call_operand.vmem [shape: f32[1,32], index: 8, kind: input, shape index: {}]
  %s9 = inlined_call_operand.vmem [shape: f32[8,32], index: 9, kind: output, shape index: {}, may-alias: {0,9}]
  %s10 = sld [smem:[#allocation0]]
  $region54: #{group_token_transformer_encoder.11} parent=0
    _
  %s12 = ssub.s32 1, %s10
  %s13 = scalar_select 0, %s12, %s10
  // Predicated region
  $region2: #{group_token_transformer_encoder.11} parent=0 // pred_check
    _
  $region3: #{group_token_transformer_encoder.11} parent=0 // pred_check_branch
    %15 = sbr.rel (0) target = $region5
  $region4: #{group_token_transformer_encoder.11} parent=0 // pred_region
    _
  $region5: #{group_token_transformer_encoder.11} parent=0 // pred_fallthru
    _
  // Predicated region
  $region6: #{group_token_transformer_encoder.11} parent=0 // pred_check
    _
  $region7: #{group_token_transformer_encoder.11} parent=0 // pred_check_branch
    %17 = sbr.rel (0) target = $region9
  $region8: #{group_token_transformer_encoder.11} parent=0 // pred_region
    _
  $region9: #{group_token_transformer_encoder.11} parent=0 // pred_fallthru
    _
  // Predicated region
  $region10: #{group_token_transformer_encoder.11} parent=0 // pred_check
    _
  $region11: #{group_token_transformer_encoder.11} parent=0 // pred_check_branch
    %19 = sbr.rel (0) target = $region13
  $region12: #{group_token_transformer_encoder.11} parent=0 // pred_region
    _
  $region13: #{group_token_transformer_encoder.11} parent=0 // pred_fallthru
    _
  // Predicated region
  $region14: #{group_token_transformer_encoder.11} parent=0 // pred_check
    _
  $region15: #{group_token_transformer_encoder.11} parent=0 // pred_check_branch
    %21 = sbr.rel (0) target = $region17
  $region16: #{group_token_transformer_encoder.11} parent=0 // pred_region
    _
  $region17: #{group_token_transformer_encoder.11} parent=0 // pred_fallthru
    _
  // Predicated region
  $region18: #{group_token_transformer_encoder.11} parent=0 // pred_check
    _
  $region19: #{group_token_transformer_encoder.11} parent=0 // pred_check_branch
    %23 = sbr.rel (0) target = $region21
  $region20: #{group_token_transformer_encoder.11} parent=0 // pred_region
    _
  $region21: #{group_token_transformer_encoder.11} parent=0 // pred_fallthru
    _
  // Predicated region
  $region22: #{group_token_transformer_encoder.11} parent=0 // pred_check
    _
  $region23: #{group_token_transformer_encoder.11} parent=0 // pred_check_branch
    %25 = sbr.rel (0) target = $region25
  $region24: #{group_token_transformer_encoder.11} parent=0 // pred_region
    _
  $region25: #{group_token_transformer_encoder.11} parent=0 // pred_fallthru
    _
  // Predicated region
  $region26: #{group_token_transformer_encoder.11} parent=0 // pred_check
    _
  $region27: #{group_token_transformer_encoder.11} parent=0 // pred_check_branch
    %27 = sbr.rel (0) target = $region29
  $region28: #{group_token_transformer_encoder.11} parent=0 // pred_region
    _
  $region29: #{group_token_transformer_encoder.11} parent=0 // pred_fallthru
    _
  // Predicated region
  $region30: #{group_token_transformer_encoder.11} parent=0 // pred_check
    _
  $region31: #{group_token_transformer_encoder.11} parent=0 // pred_check_branch
    %29 = sbr.rel (0) target = $region33
  $region32: #{group_token_transformer_encoder.11} parent=0 // pred_region
    _
  $region33: #{group_token_transformer_encoder.11} parent=0 // pred_fallthru
    _
  // Predicated region
  $region34: #{group_token_transformer_encoder.11} parent=0 // pred_check
    _
  $region35: #{group_token_transformer_encoder.11} parent=0 // pred_check_branch
    %31 = sbr.rel (0) target = $region37
  $region36: #{group_token_transformer_encoder.11} parent=0 // pred_region
    _
  $region37: #{group_token_transformer_encoder.11} parent=0 // pred_fallthru
    _
  %p33 = scmp.eq.s32.totalorder 0, 0
  // Predicated region
  $region38: #{group_token_transformer_encoder.11} parent=0 // pred_check
    %p34 = pneg %p33
  $region39: #{group_token_transformer_encoder.11} parent=0 // pred_check_branch
    %36 = sbr.rel (%p34) target = $region41
  $region40: #{group_token_transformer_encoder.11} parent=0 // pred_region
    %v37 = vld [vmem:[%s0] sm:$0xff]
    %v38 = vld [vmem:[%s1] sm:$0x1]
    %v39 = vld [vmem:[%s2] sm:$0x1]
    %vm40 = vcmask 261120
    %v41 = vsel %vm40, %v37, 0.0
    %42 = vadd.xlane.f32.xlu0 %v41
    %v43 = vpop.xlane.xlu0 %42
    %v44 = vrcp.pop 32.0
    %v45 = vmul.f32 %v43, %v44
    %v46 = vsub.f32 %v37, %v45
    %v47 = vmul.f32 %v46, %v46
    %v48 = vsel %vm40, %v47, 0.0
    %49 = vadd.xlane.f32.xlu0 %v48
    %v50 = vpop.xlane.xlu0 %49
    %v51 = vmul.f32 %v50, %v44
    %v52 = vadd.f32 %v51, 1e-05
    %v53 = vrsqrt.pop %v52
    %v54 = vmul.f32 %v46, %v53
    %v56 = vlaneseq
    %v57 = vshrl.u32 %v56, 7
    %v58 = vsub.s32 0, %v57
    %v59 = vrot.slane %v38, %v58
    %v61 = vmul.f32 %v54, %v59
    %v63 = vlaneseq
    %v64 = vshrl.u32 %v63, 7
    %v65 = vsub.s32 0, %v64
    %v66 = vrot.slane %v39, %v65
    %v68 = vadd.f32 %v61, %v66
    %v69 = vpack.c.bf16 %v68, %v68
    %vm70 = vcmask 257024
    %71 = vst.msk [vmem:[#allocation2] sm:$0xf] %vm70, %v69
    %v72 = vld [vmem:[%s6] sm:$0x1]
    %v74 = vlaneseq
    %v75 = vshrl.u32 %v74, 7
    %v76 = vsub.s32 0, %v75
    %v77 = vrot.slane %v72, %v76
    %v79 = vadd.f32 %v37, %v77
    %80 = vst.msk [vmem:[#allocation3] sm:$0xff] %vm40, %v79
  $region41: #{group_token_transformer_encoder.11} parent=0 // pred_fallthru
    _
  %v81 = vld [vmem:[#allocation2] sm:$0xf]
  %v82 = vld [vmem:[%s3] sm:$0xf]
  %v83 = vld [vmem:[%s3 + $0x4] sm:$0xf]
  %v84 = vld [vmem:[%s3 + $0x8] sm:$0xf]
  %v85 = vld [vmem:[%s3 + $0xc] sm:$0xf]
  %v86 = vld [vmem:[%s4] sm:$0x1]
  %v88 = vlaneseq
  %v89 = vshrl.u32 %v88, 7
  %v90 = vsub.s32 0, %v89
  %v91 = vrot.slane %v86, %v90
  %v97 = vunpack.c.l.b16 %v82
  %v98 = vunpack.c.l.b16 %v83
  %v99 = vunpack.c.l.b16 %v84
  %v100 = vunpack.c.l.b16 %v85
  %v101 = vpack.c.b16 %v98, %v97
  %v102 = vpack.c.b16 %v100, %v99
  %vm105 = vcmask 261120
  %v107 = vsel %vm105, %v81, 0
  %109 = vmatprep.subr.bf16.mxu0 0
  %110 = vmatpush1.bf16.msra.mxu0 0
  %111 = vmatprep.subr.bf16.mxu0 0
  %112 = vmatpush1.bf16.msra.mxu0 0
  %113 = vmatprep.subr.bf16.mxu0 0
  %114 = vmatpush1.bf16.msra.mxu0 0
  %115 = vmatprep.subr.bf16.mxu0 0
  %116 = vmatpush1.bf16.msra.mxu0 0
  %117 = vmatprep.subr.bf16.mxu0 0
  %118 = vmatpush1.bf16.msra.mxu0 0
  %119 = vmatprep.subr.bf16.mxu0 0
  %120 = vmatpush1.bf16.msra.mxu0 0
  %121 = vmatprep.subr.bf16.mxu0 0
  %122 = vmatpush1.bf16.msra.mxu0 %v102
  %123 = vmatprep.subr.bf16.mxu0 0
  %124 = vmatpush1.bf16.msra.mxu0 %v101
  %125 = vmatprep.subr.bf16.mxu0 0
  %126 = vmatpush2.bf16.msra.mxu0 0
  %127 = vmatprep.subr.bf16.mxu0 0
  %128 = vmatpush2.bf16.msra.mxu0 0
  %129 = vmatprep.subr.bf16.mxu0 0
  %130 = vmatpush2.bf16.msra.mxu0 0
  %131 = vmatprep.subr.bf16.mxu0 0
  %132 = vmatpush2.bf16.msra.mxu0 0
  %133 = vmatprep.subr.bf16.mxu0 0
  %134 = vmatpush2.bf16.msra.mxu0 0
  %135 = vmatprep.subr.bf16.mxu0 0
  %136 = vmatpush2.bf16.msra.mxu0 0
  %137 = vmatprep.subr.bf16.mxu0 0
  %138 = vmatpush2.bf16.msra.mxu0 0
  %139 = vmatprep.subr.bf16.mxu0 0
  %140 = vmatpush2.bf16.msra.mxu0 0
  %141 = vmatprep.mubr.bf16.mxu0 0
  %142 = vmatmul.mubr.bf16.gmra.mxu0 %v107
  %v143 = vpop.f32.mrf.mxu0
  %v144 = vadd.f32 %v91, %v143
  %v145 = vpop.f32.mrf.mxu0
  %v146 = vpop.f32.mrf.mxu0
  %v147 = vpop.f32.mrf.mxu0
  %148 = vdwg.mxu0
  %v149 = vmul.f32 %v144, 0.5
  %v150 = vmul.f32 %v144, 0.70710677
  %v151 = verf.f32.pop %v150
  %v152 = vadd.f32 %v151, 1.0
  %v153 = vmul.f32 %v149, %v152
  %v154 = vld [vmem:[#allocation3] sm:$0xff]
  %v155 = vpack.c.bf16 %v153, %v153
  %v156 = vld [vmem:[%s5] sm:$0xf]
  %v157 = vld [vmem:[%s5 + $0x4] sm:$0xf]
  %v158 = vld [vmem:[%s5 + $0x8] sm:$0xf]
  %v159 = vld [vmem:[%s5 + $0xc] sm:$0xf]
  %v160 = vld [vmem:[%s5 + $0x10] sm:$0xf]
  %v161 = vld [vmem:[%s5 + $0x14] sm:$0xf]
  %v162 = vld [vmem:[%s5 + $0x18] sm:$0xf]
  %v163 = vld [vmem:[%s5 + $0x1c] sm:$0xf]
  %v164 = vld [vmem:[%s5 + $0x20] sm:$0xf]
  %v165 = vld [vmem:[%s5 + $0x24] sm:$0xf]
  %v166 = vld [vmem:[%s5 + $0x28] sm:$0xf]
  %v167 = vld [vmem:[%s5 + $0x2c] sm:$0xf]
  %v168 = vld [vmem:[%s5 + $0x30] sm:$0xf]
  %v169 = vld [vmem:[%s5 + $0x34] sm:$0xf]
  %v170 = vld [vmem:[%s5 + $0x38] sm:$0xf]
  %v171 = vld [vmem:[%s5 + $0x3c] sm:$0xf]
  %v188 = vunpack.c.l.b16 %v156
  %v189 = vunpack.c.l.b16 %v157
  %v190 = vunpack.c.l.b16 %v158
  %v191 = vunpack.c.l.b16 %v159
  %v192 = vunpack.c.l.b16 %v160
  %v193 = vunpack.c.l.b16 %v161
  %v194 = vunpack.c.l.b16 %v162
  %v195 = vunpack.c.l.b16 %v163
  %v196 = vunpack.c.l.b16 %v164
  %v197 = vunpack.c.l.b16 %v165
  %v198 = vunpack.c.l.b16 %v166
  %v199 = vunpack.c.l.b16 %v167
  %v200 = vunpack.c.l.b16 %v168
  %v201 = vunpack.c.l.b16 %v169
  %v202 = vunpack.c.l.b16 %v170
  %v203 = vunpack.c.l.b16 %v171
  %v204 = vpack.c.b16 %v189, %v188
  %v205 = vpack.c.b16 %v191, %v190
  %v206 = vpack.c.b16 %v193, %v192
  %v207 = vpack.c.b16 %v195, %v194
  %v208 = vpack.c.b16 %v197, %v196
  %v209 = vpack.c.b16 %v199, %v198
  %v210 = vpack.c.b16 %v201, %v200
  %v211 = vpack.c.b16 %v203, %v202
  %220 = vmatprep.subr.bf16.mxu0 0
  %221 = vmatpush1.bf16.msra.mxu0 %v211
  %222 = vmatprep.subr.bf16.mxu0 0
  %223 = vmatpush1.bf16.msra.mxu0 %v210
  %224 = vmatprep.subr.bf16.mxu0 0
  %225 = vmatpush1.bf16.msra.mxu0 %v209
  %226 = vmatprep.subr.bf16.mxu0 0
  %227 = vmatpush1.bf16.msra.mxu0 %v208
  %228 = vmatprep.subr.bf16.mxu0 0
  %229 = vmatpush1.bf16.msra.mxu0 %v207
  %230 = vmatprep.subr.bf16.mxu0 0
  %231 = vmatpush1.bf16.msra.mxu0 %v206
  %232 = vmatprep.subr.bf16.mxu0 0
  %233 = vmatpush1.bf16.msra.mxu0 %v205
  %234 = vmatprep.subr.bf16.mxu0 0
  %235 = vmatpush1.bf16.msra.mxu0 %v204
  %236 = vmatprep.subr.bf16.mxu0 0
  %237 = vmatpush2.bf16.msra.mxu0 0
  %238 = vmatprep.subr.bf16.mxu0 0
  %239 = vmatpush2.bf16.msra.mxu0 0
  %240 = vmatprep.subr.bf16.mxu0 0
  %241 = vmatpush2.bf16.msra.mxu0 0
  %242 = vmatprep.subr.bf16.mxu0 0
  %243 = vmatpush2.bf16.msra.mxu0 0
  %244 = vmatprep.subr.bf16.mxu0 0
  %245 = vmatpush2.bf16.msra.mxu0 0
  %246 = vmatprep.subr.bf16.mxu0 0
  %247 = vmatpush2.bf16.msra.mxu0 0
  %248 = vmatprep.subr.bf16.mxu0 0
  %249 = vmatpush2.bf16.msra.mxu0 0
  %250 = vmatprep.subr.bf16.mxu0 0
  %251 = vmatpush2.bf16.msra.mxu0 0
  %252 = vmatprep.mubr.bf16.mxu0 0
  %253 = vmatmul.mubr.bf16.gmra.mxu0 %v155
  %v254 = vpop.f32.mrf.mxu0
  %v255 = vadd.f32 0.0, %v254
  %v256 = vpop.f32.mrf.mxu0
  %v257 = vpop.f32.mrf.mxu0
  %v258 = vpop.f32.mrf.mxu0
  %259 = vdwg.mxu0
  %v260 = vadd.f32 %v154, %v255
  %261 = vst.msk [vmem:[#allocation3] sm:$0xff] %vm105, %v260
  // Predicated region
  $region42: #{group_token_transformer_encoder.11} parent=0 // pred_check
    %p262 = pneg %p33
  $region43: #{group_token_transformer_encoder.11} parent=0 // pred_check_branch
    %264 = sbr.rel (%p262) target = $region45
  $region44: #{group_token_transformer_encoder.11} parent=0 // pred_region
    %v265 = vld [vmem:[#allocation3] sm:$0xff]
    %v266 = vld [vmem:[%s7] sm:$0x1]
    %v267 = vld [vmem:[%s8] sm:$0x1]
    %v268 = vsel %vm105, %v265, 0.0
    %269 = vadd.xlane.f32.xlu0 %v268
    %v270 = vpop.xlane.xlu0 %269
    %v271 = vrcp.pop 32.0
    %v272 = vmul.f32 %v270, %v271
    %v273 = vsub.f32 %v265, %v272
    %v274 = vmul.f32 %v273, %v273
    %v275 = vsel %vm105, %v274, 0.0
    %276 = vadd.xlane.f32.xlu0 %v275
    %v277 = vpop.xlane.xlu0 %276
    %v278 = vmul.f32 %v277, %v271
    %v279 = vadd.f32 %v278, 1e-05
    %v280 = vrsqrt.pop %v279
    %v281 = vmul.f32 %v273, %v280
    %v283 = vlaneseq
    %v284 = vshrl.u32 %v283, 7
    %v285 = vsub.s32 0, %v284
    %v286 = vrot.slane %v266, %v285
    %v288 = vmul.f32 %v281, %v286
    %v290 = vlaneseq
    %v291 = vshrl.u32 %v290, 7
    %v292 = vsub.s32 0, %v291
    %v293 = vrot.slane %v267, %v292
    %v295 = vadd.f32 %v288, %v293
    %296 = vst.msk [vmem:[%s9] sm:$0xff] %vm105, %v295
  $region45: #{group_token_transformer_encoder.11} parent=0 // pred_fallthru
    _
  // Predicated region
  $region46: #{group_token_transformer_encoder.11} parent=0 // pred_check
    _
  $region47: #{group_token_transformer_encoder.11} parent=0 // pred_check_branch
    %298 = sbr.rel (0) target = $region49
  $region48: #{group_token_transformer_encoder.11} parent=0 // pred_region
    _
  $region49: #{group_token_transformer_encoder.11} parent=0 // pred_fallthru
    _
  // Predicated region
  $region50: #{group_token_transformer_encoder.11} parent=0 // pred_check
    _
  $region51: #{group_token_transformer_encoder.11} parent=0 // pred_check_branch
    %300 = sbr.rel (0) target = $region53
  $region52: #{group_token_transformer_encoder.11} parent=0 // pred_region
    _
  $region53: #{group_token_transformer_encoder.11} parent=0 // pred_fallthru
    _

</llo_original>
